<compile_context>
chip_gen: v7x
topology: tpu7x:2x2x1
jax: 0.10.0
libtpu: 0.0.40
codegen_flags: <defaults>
</compile_context>

<pallas_src>
import math
import functools

import numpy as np
import jax
import jax.numpy as jnp
from jax import lax
from jax.experimental import pallas as pl
from jax.experimental.pallas import tpu as pltpu


# --------------------------------------------------------------------------------------
# Kernel 1: fused QKV projection + RoPE, head-major bf16 output [B, H+2KV, S, hd].
# --------------------------------------------------------------------------------------
def qkv_rope_kernel(x_ref, w_ref, cos_ref, sin_ref, out_ref, *,
                    n_rope_heads, head_dim, heads_per_step):
    c = pl.program_id(2)
    half = head_dim // 2
    x = x_ref[0]                                    # [ts, D]    bf16
    cos = cos_ref[0]                                # [ts, hd/2] f32
    sin = sin_ref[0]                                # [ts, hd/2] f32
    for i in range(heads_per_step):
        # Per-head matmul against a static slice of the streamed weight slab:
        # keeps the live f32 intermediate at [ts, hd] (no vreg spills), K = D for MXU.
        w_i = w_ref[0, :, pl.ds(i * head_dim, head_dim)]               # [D, hd] bf16
        t = jnp.dot(x, w_i, preferred_element_type=jnp.float32)        # [ts, hd] f32
        # Weights for q/k heads were pre-permuted to [even feats | odd feats], so RoPE is
        # the plain half-split rotation with half-width tables (no rotate / no full-width
        # duplicated tables).
        x1 = t[:, :half]
        x2 = t[:, half:]
        roped = jnp.concatenate([x1 * cos - x2 * sin,
                                 x2 * cos + x1 * sin], axis=-1)        # [ts, hd] f32
        # v heads (global head index >= n_rope_heads) bypass RoPE. Scalar arithmetic
        # blend (avoids a bool-broadcast select).
        head = c * heads_per_step + i
        flag = (head < n_rope_heads).astype(jnp.float32)
        val = flag * roped + (1.0 - flag) * t
        out_ref[0, i] = val.astype(out_ref.dtype)


# --------------------------------------------------------------------------------------
# Kernel 2: causal flash attention (online softmax), triangular (q, kv) tile schedule.
# --------------------------------------------------------------------------------------
def flash_attn_kernel(qi_tab_ref, kvi_tab_ref, q_ref, k_ref, v_ref, o_ref,
                      m_sc, l_sc, acc_sc, *, n_kv_head, group, head_dim, tq, tk):
    t = pl.program_id(1)
    qi = qi_tab_ref[t]
    kvi = kvi_tab_ref[t]

    @pl.when(kvi == 0)
    def _init():
        m_sc[...] = jnp.full(m_sc.shape, -1e30, dtype=m_sc.dtype)
        l_sc[...] = jnp.zeros(l_sc.shape, dtype=l_sc.dtype)
        acc_sc[...] = jnp.zeros(acc_sc.shape, dtype=acc_sc.dtype)

    def online_softmax_step(masked):
        if masked:
            r = lax.broadcasted_iota(jnp.int32, (group, tq, tk), 1)
            cidx = lax.broadcasted_iota(jnp.int32, (group, tq, tk), 2)
            keep = cidx <= r                    # diagonal tile: qi == kvi and tq == tk
        for j in range(n_kv_head):
            # GQA: batch the `group` query heads of kv head j along M (exact: softmax
            # is row-wise).  q was pre-scaled by 1/sqrt(head_dim) in kernel 1.
            q_g = q_ref[0, pl.ds(j * group, group)].reshape(group * tq, head_dim)
            k_j = k_ref[0, j]                                        # [tk, hd] bf16
            v_j = v_ref[0, j]                                        # [tk, hd] bf16
            s = lax.dot_general(q_g, k_j, (((1,), (1,)), ((), ())),
                                preferred_element_type=jnp.float32)  # [g*tq, tk] f32
            if masked:
                s = jnp.where(keep, s.reshape(group, tq, tk),
                              -1e30).reshape(group * tq, tk)
            m_prev = m_sc[j]                                          # [g*tq, 1]
            m_new = jnp.maximum(m_prev, jnp.max(s, axis=-1, keepdims=True))
            alpha = jnp.exp(m_prev - m_new)
            p = jnp.exp(s - m_new)
            l_sc[j] = alpha * l_sc[j] + jnp.sum(p, axis=-1, keepdims=True)
            acc_sc[j] = alpha * acc_sc[j] + jnp.dot(p.astype(v_j.dtype), v_j,
                                                    preferred_element_type=jnp.float32)
            m_sc[j] = m_new

    @pl.when(kvi < qi)          # fully-unmasked tiles: no iota / compare / select
    def _off_diag():
        online_softmax_step(masked=False)

    @pl.when(kvi == qi)         # diagonal tile: apply the causal mask
    def _diag():
        online_softmax_step(masked=True)

    @pl.when(kvi == qi)         # diagonal == last live tile of this q row: finalize
    def _finalize():
        for j in range(n_kv_head):
            inv_l = pl.reciprocal(l_sc[j], approx=True)               # EUP slot
            o_j = (acc_sc[j] * inv_l).astype(o_ref.dtype)             # [g*tq, hd]
            o_j = o_j.reshape(group, tq, head_dim)
            for g in range(group):
                h = j * group + g
                o_ref[0, :, pl.ds(h * head_dim, head_dim)] = o_j[g]


# --------------------------------------------------------------------------------------
# Kernel 3: tiled output projection GEMM (attention output @ Wo^T).
# --------------------------------------------------------------------------------------
def out_proj_kernel(a_ref, b_ref, o_ref, acc_ref):
    @pl.when(pl.program_id(2) == 0)
    def _init():
        acc_ref[...] = jnp.zeros(acc_ref.shape, acc_ref.dtype)

    acc_ref[...] += jnp.dot(a_ref[...], b_ref[...],
                            preferred_element_type=jnp.float32)

    @pl.when(pl.program_id(2) == pl.num_programs(2) - 1)
    def _store():
        o_ref[...] = acc_ref[...].astype(o_ref.dtype)


# --------------------------------------------------------------------------------------
# Wrapper
# --------------------------------------------------------------------------------------
def _pick_tile(n, preferred):
    for t in (preferred, 512, 256, 128, 64, 32, 16, 8):
        if t <= n and n % t == 0:
            return t
    return n


def _pick_head_group(total_heads, head_dim, col_budget=512):
    best = 1
    for g in range(1, total_heads + 1):
        if total_heads % g == 0 and g * head_dim <= col_budget:
            best = g
    return best


def _vmem_limit(block_bytes, scratch_bytes=0):
    # double-buffered blocks + scratch, 50% headroom; clamp to [8 MiB, 64 MiB]
    # (stay under v7x's 64 MiB physical VMEM).
    est = int((2 * block_bytes + scratch_bytes) * 1.5) + (1 << 20)
    return max(8 << 20, min(est, 64 << 20))


def attention_forward(x, wqkv_w, wo_w, freqs_cis, *, n_head, n_kv_head,
                      seq_tile=512, q_tile=256):
    """x: [B,S,D] f32; wqkv_w: [(H+2KV)*hd, D]; wo_w: [D, D]; freqs_cis: [B,S,hd//2,2]."""
    B, S, D = x.shape
    assert D % n_head == 0
    head_dim = D // n_head
    half = head_dim // 2
    assert head_dim % 2 == 0
    n_kv_head = n_kv_head if n_kv_head is not None else n_head
    assert n_head % n_kv_head == 0
    group = n_head // n_kv_head
    total_heads = n_head + 2 * n_kv_head
    total = total_heads * head_dim
    assert wqkv_w.shape == (total, D) and wo_w.shape == (D, D)

    cdt = jnp.bfloat16                     # matmul operand dtype (f32 accumulation)
    q_scale = 1.0 / math.sqrt(head_dim)

    ts = _pick_tile(S, seq_tile)
    tq = _pick_tile(S, q_tile)
    tk = tq                                # tq == tk keeps the diagonal mask simple
    n_s, n_q = S // ts, S // tq
    hg = _pick_head_group(total_heads, head_dim)
    n_c = total_heads // hg

    # --- host-side weight / table prep (layout only, done once) ---
    # per-head [evens | odds] column permutation for q and k sections (v untouched):
    # turns interleaved RoPE into the half-split rotation inside kernel 1.
    even_odd = np.concatenate([np.arange(0, head_dim, 2, dtype=np.int32),
                               np.arange(1, head_dim, 2, dtype=np.int32)])
    perm = np.arange(total, dtype=np.int32)
    for h in range(n_head + n_kv_head):
        perm[h * head_dim:(h + 1) * head_dim] = h * head_dim + even_odd
    w = jnp.take(jnp.asarray(wqkv_w, jnp.float32).T, jnp.asarray(perm), axis=1)   # [D, total]
    # fold the attention scale into the q columns (linear, exact).
    col_scale = jnp.concatenate([
        jnp.full((n_head * head_dim,), q_scale, jnp.float32),
        jnp.ones((2 * n_kv_head * head_dim,), jnp.float32)])
    w = (w * col_scale[None, :]).astype(cdt)
    wqkv_t = w.reshape(D, n_c, hg * head_dim).transpose(1, 0, 2)       # [n_c, D, hg*hd]

    wo_t = jnp.asarray(wo_w, jnp.float32).T.astype(cdt)                # [D, D]

    # half-width RoPE tables (no full-width duplication, no sign folding needed).
    cos_tab = freqs_cis[..., 0].astype(jnp.float32)                    # [B, S, hd//2]
    sin_tab = freqs_cis[..., 1].astype(jnp.float32)                    # [B, S, hd//2]

    x_c = x.astype(cdt)

    # ---- kernel 1: QKV projection + RoPE ----
    k1 = functools.partial(qkv_rope_kernel, n_rope_heads=n_head + n_kv_head,
                           head_dim=head_dim, heads_per_step=hg)
    blk1 = (ts * D + D * hg * head_dim + hg * ts * head_dim) * 2 + 2 * ts * half * 4
    qkv_hm = pl.pallas_call(
        k1,
        out_shape=jax.ShapeDtypeStruct((B, total_heads, S, head_dim), cdt),
        grid_spec=pltpu.PrefetchScalarGridSpec(
            num_scalar_prefetch=0,
            grid=(B, n_s, n_c),
            in_specs=[
                pl.BlockSpec((1, ts, D), lambda b, s, c: (b, s, 0)),            # x
                pl.BlockSpec((1, D, hg * head_dim), lambda b, s, c: (c, 0, 0)), # Wqkv slab
                pl.BlockSpec((1, ts, half), lambda b, s, c: (b, s, 0)),         # cos
                pl.BlockSpec((1, ts, half), lambda b, s, c: (b, s, 0)),         # sin
            ],
            out_specs=pl.BlockSpec((1, hg, ts, head_dim),
                                   lambda b, s, c: (b, c, s, 0)),
        ),
        compiler_params=pltpu.CompilerParams(
            dimension_semantics=("parallel", "parallel", "arbitrary"),
            vmem_limit_bytes=_vmem_limit(blk1)),
    )(x_c, wqkv_t, cos_tab, sin_tab)

    # ---- kernel 2: flash attention over lower-triangular (q, kv) tiles ----
    qi_list, kvi_list = [], []
    for qi in range(n_q):
        for kvi in range(qi + 1):
            qi_list.append(qi)
            kvi_list.append(kvi)
    qi_tab = jnp.asarray(qi_list, dtype=jnp.int32)
    kvi_tab = jnp.asarray(kvi_list, dtype=jnp.int32)
    n_tri = len(qi_list)

    k2 = functools.partial(flash_attn_kernel, n_kv_head=n_kv_head, group=group,
                           head_dim=head_dim, tq=tq, tk=tk)
    blk2 = (n_head * tq * head_dim + 2 * n_kv_head * tk * head_dim + tq * D) * 2
    scr2 = n_kv_head * group * tq * (head_dim + 2) * 4
    attn = pl.pallas_call(
        k2,
        out_shape=jax.ShapeDtypeStruct((B, S, D), cdt),
        grid_spec=pltpu.PrefetchScalarGridSpec(
            num_scalar_prefetch=2,
            grid=(B, n_tri),
            in_specs=[
                pl.BlockSpec((1, n_head, tq, head_dim),
                             lambda b, t, qt, kt: (b, 0, qt[t], 0)),            # q heads
                pl.BlockSpec((1, n_kv_head, tk, head_dim),
                             lambda b, t, qt, kt: (b, group, kt[t], 0)),        # k heads
                pl.BlockSpec((1, n_kv_head, tk, head_dim),
                             lambda b, t, qt, kt: (b, group + 1, kt[t], 0)),    # v heads
            ],
            out_specs=pl.BlockSpec((1, tq, D), lambda b, t, qt, kt: (b, qt[t], 0)),
            scratch_shapes=[
                pltpu.VMEM((n_kv_head, group * tq, 1), jnp.float32),         # running max
                pltpu.VMEM((n_kv_head, group * tq, 1), jnp.float32),         # running sum
                pltpu.VMEM((n_kv_head, group * tq, head_dim), jnp.float32),  # accumulator
            ],
        ),
        compiler_params=pltpu.CompilerParams(
            dimension_semantics=("parallel", "arbitrary"),
            vmem_limit_bytes=_vmem_limit(blk2, scr2)),
    )(qi_tab, kvi_tab, qkv_hm, qkv_hm, qkv_hm)

    # ---- kernel 3: output projection (separate tiled GEMM; no resident [D,D] in k2) ----
    M = B * S
    tm = _pick_tile(M, 256)
    tn = _pick_tile(D, 256)
    tkk = _pick_tile(D, 512)
    out_itemsize = np.dtype(x.dtype).itemsize
    blk3 = tm * tkk * 2 + tkk * tn * 2 + tm * tn * out_itemsize
    scr3 = tm * tn * 4
    out_flat = pl.pallas_call(
        out_proj_kernel,
        out_shape=jax.ShapeDtypeStruct((M, D), x.dtype),
        grid_spec=pltpu.PrefetchScalarGridSpec(
            num_scalar_prefetch=0,
            grid=(M // tm, D // tn, D // tkk),
            in_specs=[
                pl.BlockSpec((tm, tkk), lambda i, j, k: (i, k)),
                pl.BlockSpec((tkk, tn), lambda i, j, k: (k, j)),
            ],
            out_specs=pl.BlockSpec((tm, tn), lambda i, j, k: (i, j)),
            scratch_shapes=[pltpu.VMEM((tm, tn), jnp.float32)],
        ),
        compiler_params=pltpu.CompilerParams(
            dimension_semantics=("parallel", "parallel", "arbitrary"),
            vmem_limit_bytes=_vmem_limit(blk3, scr3)),
    )(attn.reshape(M, D), wo_t)

    return out_flat.reshape(B, S, D)


# --------------------------------------------------------------------------------------
# Pure-JAX reference (f32) mirroring the PyTorch forward (eval, mask=None, no kv_cache).
# --------------------------------------------------------------------------------------
def reference_forward(x, wqkv_w, wo_w, freqs_cis, *, n_head, n_kv_head):
    B, S, D = x.shape
    hd = D // n_head
    kv_size = n_kv_head * hd

    qkv = x @ wqkv_w.T
    q, k, v = qkv[..., :D], qkv[..., D:D + kv_size], qkv[..., D + kv_size:]
    q = q.reshape(B, S, n_head, hd)
    k = k.reshape(B, S, n_kv_head, hd)
    v = v.reshape(B, S, n_kv_head, hd)

    def rope(t):
        ts_ = t.reshape(*t.shape[:-1], hd // 2, 2)
        f = freqs_cis.reshape(B, S, 1, hd // 2, 2)
        out = jnp.stack([ts_[..., 0] * f[..., 0] - ts_[..., 1] * f[..., 1],
                         ts_[..., 1] * f[..., 0] + ts_[..., 0] * f[..., 1]], axis=-1)
        return out.reshape(*t.shape)

    q, k = rope(q), rope(k)
    q, k, v = (t.transpose(0, 2, 1, 3) for t in (q, k, v))   # [B,H,S,hd]
    rep = n_head // n_kv_head
    k = jnp.repeat(k, rep, axis=1)
    v = jnp.repeat(v, rep, axis=1)

    scores = jnp.einsum('bhqd,bhkd->bhqk', q, k) / math.sqrt(hd)
    causal = jnp.tril(jnp.ones((S, S), bool))
    scores = jnp.where(causal, scores, -jnp.inf)
    p = jax.nn.softmax(scores, axis=-1)
    out = jnp.einsum('bhqk,bhkd->bhqd', p, v)
    out = out.transpose(0, 2, 1, 3).reshape(B, S, D)
    return out @ wo_w.T


if __name__ == "__main__":
    # Small shapes consistent with the module.
    B, S = 2, 8
    n_head, n_kv_head = 4, 2
    dim = 32
    head_dim = dim // n_head
    total_kv_dim = (n_head + 2 * n_kv_head) * head_dim

    key = jax.random.PRNGKey(0)
    kx, kqkv, kwo = jax.random.split(key, 3)
    x = jax.random.normal(kx, (B, S, dim), dtype=jnp.float32)
    wqkv_w = jax.random.normal(kqkv, (total_kv_dim, dim), dtype=jnp.float32) * 0.05
    wo_w = jax.random.normal(kwo, (dim, dim), dtype=jnp.float32) * 0.05

    # Deterministic rotary frequencies, shape [B, S, head_dim//2, 2].
    pos = jnp.arange(S, dtype=jnp.float32)
    inv_freq = 1.0 / (10000.0 ** (jnp.arange(0, head_dim, 2, dtype=jnp.float32) / head_dim))
    ang = pos[:, None] * inv_freq[None, :]                              # [S, hd//2]
    freqs_cis = jnp.stack([jnp.cos(ang), jnp.sin(ang)], axis=-1)        # [S, hd//2, 2]
    freqs_cis = jnp.broadcast_to(freqs_cis, (B, S, head_dim // 2, 2))

    out = attention_forward(x, wqkv_w, wo_w, freqs_cis,
                            n_head=n_head, n_kv_head=n_kv_head)
    out = jax.block_until_ready(out)

    ref = reference_forward(x, wqkv_w, wo_w, freqs_cis,
                            n_head=n_head, n_kv_head=n_kv_head)
    ref = jax.block_until_ready(ref)

    assert out.shape == (B, S, dim) and out.dtype == jnp.float32
    # bf16 matmul operands (f32 accumulation) -> relaxed tolerance vs the f32 reference.
    np.testing.assert_allclose(np.asarray(out), np.asarray(ref), rtol=5e-2, atol=1e-2)
    print("KERNEL_OK")
</pallas_src>

<mosaic_0001>
module attributes {stable_mosaic.version = 11 : i64} {
  func.func @qkv_rope_kernel(%arg0: i32, %arg1: i32, %arg2: i32, %arg3: memref<1x8x32xbf16, #tpu.memory_space<vmem>>, %arg4: memref<1x32x64xbf16, #tpu.memory_space<vmem>>, %arg5: memref<1x8x4xf32, #tpu.memory_space<vmem>>, %arg6: memref<1x8x4xf32, #tpu.memory_space<vmem>>, %arg7: memref<1x8x8x8xbf16, #tpu.memory_space<vmem>>) attributes {dimension_semantics = [#tpu.dimension_semantics<parallel>, #tpu.dimension_semantics<parallel>, #tpu.dimension_semantics<arbitrary>], iteration_bounds = array<i64: 2, 1, 1>, scalar_prefetch = 0 : i64, scratch_operands = 0 : i64, tpu.core_type = #tpu.core_type<tc>, window_params = [{transform_indices = @transform_0, window_bounds = array<i64: 1, 8, 32>}, {transform_indices = @transform_1, window_bounds = array<i64: 1, 32, 64>}, {transform_indices = @transform_2, window_bounds = array<i64: 1, 8, 4>}, {transform_indices = @transform_3, window_bounds = array<i64: 1, 8, 4>}, {transform_indices = @transform_4, window_bounds = array<i64: 1, 8, 8, 8>}]} {
    %c0 = arith.constant 0 : index
    %c0_0 = arith.constant 0 : index
    %c0_1 = arith.constant 0 : index
    %0 = vector.load %arg3[%c0, %c0_0, %c0_1] : memref<1x8x32xbf16, #tpu.memory_space<vmem>>, vector<1x8x32xbf16>
    %1 = vector.shape_cast %0 : vector<1x8x32xbf16> to vector<8x32xbf16>
    %c0_2 = arith.constant 0 : index
    %c0_3 = arith.constant 0 : index
    %c0_4 = arith.constant 0 : index
    %2 = vector.load %arg5[%c0_2, %c0_3, %c0_4] : memref<1x8x4xf32, #tpu.memory_space<vmem>>, vector<1x8x4xf32>
    %3 = vector.shape_cast %2 : vector<1x8x4xf32> to vector<8x4xf32>
    %c0_5 = arith.constant 0 : index
    %c0_6 = arith.constant 0 : index
    %c0_7 = arith.constant 0 : index
    %4 = vector.load %arg6[%c0_5, %c0_6, %c0_7] : memref<1x8x4xf32, #tpu.memory_space<vmem>>, vector<1x8x4xf32>
    %5 = vector.shape_cast %4 : vector<1x8x4xf32> to vector<8x4xf32>
    %c0_8 = arith.constant 0 : index
    %c0_9 = arith.constant 0 : index
    %c0_10 = arith.constant 0 : index
    %6 = vector.load %arg4[%c0_8, %c0_9, %c0_10] : memref<1x32x64xbf16, #tpu.memory_space<vmem>>, vector<1x32x8xbf16>
    %7 = vector.shape_cast %6 : vector<1x32x8xbf16> to vector<32x8xbf16>
    %cst = arith.constant dense<0.000000e+00> : vector<8x8xf32>
    %8 = tpu.matmul %1, %7, %cst {dimension_numbers = #tpu.dot_dimension_numbers<[1], [0], [0], [1], [0, 0, 1, 1], [], []>} : vector<8x32xbf16>, vector<32x8xbf16>, vector<8x8xf32> -> vector<8x8xf32>
    %9 = vector.extract_strided_slice %8 {offsets = [0, 0], sizes = [8, 4], strides = [1, 1]} : vector<8x8xf32> to vector<8x4xf32>
    %10 = vector.extract_strided_slice %8 {offsets = [0, 4], sizes = [8, 4], strides = [1, 1]} : vector<8x8xf32> to vector<8x4xf32>
    %11 = arith.mulf %9, %3 : vector<8x4xf32>
    %12 = arith.mulf %10, %5 : vector<8x4xf32>
    %13 = arith.subf %11, %12 : vector<8x4xf32>
    %14 = arith.mulf %10, %3 : vector<8x4xf32>
    %15 = arith.mulf %9, %5 : vector<8x4xf32>
    %16 = arith.addf %14, %15 : vector<8x4xf32>
    %17 = tpu.concatenate %13, %16 in 1 : vector<8x4xf32>, vector<8x4xf32> -> vector<8x8xf32>
    %c8_i32 = arith.constant 8 : i32
    %18 = arith.muli %arg2, %c8_i32 : i32
    %c0_i32 = arith.constant 0 : i32
    %19 = arith.addi %18, %c0_i32 : i32
    %c6_i32 = arith.constant 6 : i32
    %20 = arith.cmpi slt, %19, %c6_i32 : i32
    %21 = arith.extui %20 : i1 to i32
    %22 = arith.sitofp %21 : i32 to f32
    %23 = vector.broadcast %22 : f32 to vector<8x8xf32>
    %24 = arith.mulf %23, %17 : vector<8x8xf32>
    %cst_11 = arith.constant 1.000000e+00 : f32
    %25 = arith.subf %cst_11, %22 : f32
    %26 = vector.broadcast %25 : f32 to vector<8x8xf32>
    %27 = arith.mulf %26, %8 : vector<8x8xf32>
    %28 = arith.addf %24, %27 : vector<8x8xf32>
    %29 = arith.truncf %28 : vector<8x8xf32> to vector<8x8xbf16>
    %c0_12 = arith.constant 0 : index
    %c0_13 = arith.constant 0 : index
    %c0_14 = arith.constant 0 : index
    %c0_15 = arith.constant 0 : index
    %30 = vector.load %arg7[%c0_12, %c0_13, %c0_14, %c0_15] : memref<1x8x8x8xbf16, #tpu.memory_space<vmem>>, vector<1x1x8x8xbf16>
    %31 = vector.shape_cast %30 : vector<1x1x8x8xbf16> to vector<8x8xbf16>
    %32 = vector.shape_cast %29 : vector<8x8xbf16> to vector<1x1x8x8xbf16>
    tpu.vector_store %arg7[%c0_12, %c0_13, %c0_14, %c0_15], %32 {strides = array<i32>} : memref<1x8x8x8xbf16, #tpu.memory_space<vmem>>, vector<1x1x8x8xbf16>,
    %c0_16 = arith.constant 0 : index
    %c0_17 = arith.constant 0 : index
    %c8 = arith.constant 8 : index
    %33 = vector.load %arg4[%c0_16, %c0_17, %c8] : memref<1x32x64xbf16, #tpu.memory_space<vmem>>, vector<1x32x8xbf16>
    %34 = vector.shape_cast %33 : vector<1x32x8xbf16> to vector<32x8xbf16>
    %cst_18 = arith.constant dense<0.000000e+00> : vector<8x8xf32>
    %35 = tpu.matmul %1, %34, %cst_18 {dimension_numbers = #tpu.dot_dimension_numbers<[1], [0], [0], [1], [0, 0, 1, 1], [], []>} : vector<8x32xbf16>, vector<32x8xbf16>, vector<8x8xf32> -> vector<8x8xf32>
    %36 = vector.extract_strided_slice %35 {offsets = [0, 0], sizes = [8, 4], strides = [1, 1]} : vector<8x8xf32> to vector<8x4xf32>
    %37 = vector.extract_strided_slice %35 {offsets = [0, 4], sizes = [8, 4], strides = [1, 1]} : vector<8x8xf32> to vector<8x4xf32>
    %38 = arith.mulf %36, %3 : vector<8x4xf32>
    %39 = arith.mulf %37, %5 : vector<8x4xf32>
    %40 = arith.subf %38, %39 : vector<8x4xf32>
    %41 = arith.mulf %37, %3 : vector<8x4xf32>
    %42 = arith.mulf %36, %5 : vector<8x4xf32>
    %43 = arith.addf %41, %42 : vector<8x4xf32>
    %44 = tpu.concatenate %40, %43 in 1 : vector<8x4xf32>, vector<8x4xf32> -> vector<8x8xf32>
    %c8_i32_19 = arith.constant 8 : i32
    %45 = arith.muli %arg2, %c8_i32_19 : i32
    %c1_i32 = arith.constant 1 : i32
    %46 = arith.addi %45, %c1_i32 : i32
    %c6_i32_20 = arith.constant 6 : i32
    %47 = arith.cmpi slt, %46, %c6_i32_20 : i32
    %48 = arith.extui %47 : i1 to i32
    %49 = arith.sitofp %48 : i32 to f32
    %50 = vector.broadcast %49 : f32 to vector<8x8xf32>
    %51 = arith.mulf %50, %44 : vector<8x8xf32>
    %cst_21 = arith.constant 1.000000e+00 : f32
    %52 = arith.subf %cst_21, %49 : f32
    %53 = vector.broadcast %52 : f32 to vector<8x8xf32>
    %54 = arith.mulf %53, %35 : vector<8x8xf32>
    %55 = arith.addf %51, %54 : vector<8x8xf32>
    %56 = arith.truncf %55 : vector<8x8xf32> to vector<8x8xbf16>
    %c0_22 = arith.constant 0 : index
    %c1 = arith.constant 1 : index
    %c0_23 = arith.constant 0 : index
    %c0_24 = arith.constant 0 : index
    %57 = vector.load %arg7[%c0_22, %c1, %c0_23, %c0_24] : memref<1x8x8x8xbf16, #tpu.memory_space<vmem>>, vector<1x1x8x8xbf16>
    %58 = vector.shape_cast %57 : vector<1x1x8x8xbf16> to vector<8x8xbf16>
    %59 = vector.shape_cast %56 : vector<8x8xbf16> to vector<1x1x8x8xbf16>
    tpu.vector_store %arg7[%c0_22, %c1, %c0_23, %c0_24], %59 {strides = array<i32>} : memref<1x8x8x8xbf16, #tpu.memory_space<vmem>>, vector<1x1x8x8xbf16>,
    %c0_25 = arith.constant 0 : index
    %c0_26 = arith.constant 0 : index
    %c16 = arith.constant 16 : index
    %60 = vector.load %arg4[%c0_25, %c0_26, %c16] : memref<1x32x64xbf16, #tpu.memory_space<vmem>>, vector<1x32x8xbf16>
    %61 = vector.shape_cast %60 : vector<1x32x8xbf16> to vector<32x8xbf16>
    %cst_27 = arith.constant dense<0.000000e+00> : vector<8x8xf32>
    %62 = tpu.matmul %1, %61, %cst_27 {dimension_numbers = #tpu.dot_dimension_numbers<[1], [0], [0], [1], [0, 0, 1, 1], [], []>} : vector<8x32xbf16>, vector<32x8xbf16>, vector<8x8xf32> -> vector<8x8xf32>
    %63 = vector.extract_strided_slice %62 {offsets = [0, 0], sizes = [8, 4], strides = [1, 1]} : vector<8x8xf32> to vector<8x4xf32>
    %64 = vector.extract_strided_slice %62 {offsets = [0, 4], sizes = [8, 4], strides = [1, 1]} : vector<8x8xf32> to vector<8x4xf32>
    %65 = arith.mulf %63, %3 : vector<8x4xf32>
    %66 = arith.mulf %64, %5 : vector<8x4xf32>
    %67 = arith.subf %65, %66 : vector<8x4xf32>
    %68 = arith.mulf %64, %3 : vector<8x4xf32>
    %69 = arith.mulf %63, %5 : vector<8x4xf32>
    %70 = arith.addf %68, %69 : vector<8x4xf32>
    %71 = tpu.concatenate %67, %70 in 1 : vector<8x4xf32>, vector<8x4xf32> -> vector<8x8xf32>
    %c8_i32_28 = arith.constant 8 : i32
    %72 = arith.muli %arg2, %c8_i32_28 : i32
    %c2_i32 = arith.constant 2 : i32
    %73 = arith.addi %72, %c2_i32 : i32
    %c6_i32_29 = arith.constant 6 : i32
    %74 = arith.cmpi slt, %73, %c6_i32_29 : i32
    %75 = arith.extui %74 : i1 to i32
    %76 = arith.sitofp %75 : i32 to f32
    %77 = vector.broadcast %76 : f32 to vector<8x8xf32>
    %78 = arith.mulf %77, %71 : vector<8x8xf32>
    %cst_30 = arith.constant 1.000000e+00 : f32
    %79 = arith.subf %cst_30, %76 : f32
    %80 = vector.broadcast %79 : f32 to vector<8x8xf32>
    %81 = arith.mulf %80, %62 : vector<8x8xf32>
    %82 = arith.addf %78, %81 : vector<8x8xf32>
    %83 = arith.truncf %82 : vector<8x8xf32> to vector<8x8xbf16>
    %c0_31 = arith.constant 0 : index
    %c2 = arith.constant 2 : index
    %c0_32 = arith.constant 0 : index
    %c0_33 = arith.constant 0 : index
    %84 = vector.load %arg7[%c0_31, %c2, %c0_32, %c0_33] : memref<1x8x8x8xbf16, #tpu.memory_space<vmem>>, vector<1x1x8x8xbf16>
    %85 = vector.shape_cast %84 : vector<1x1x8x8xbf16> to vector<8x8xbf16>
    %86 = vector.shape_cast %83 : vector<8x8xbf16> to vector<1x1x8x8xbf16>
    tpu.vector_store %arg7[%c0_31, %c2, %c0_32, %c0_33], %86 {strides = array<i32>} : memref<1x8x8x8xbf16, #tpu.memory_space<vmem>>, vector<1x1x8x8xbf16>,
    %c0_34 = arith.constant 0 : index
    %c0_35 = arith.constant 0 : index
    %c24 = arith.constant 24 : index
    %87 = vector.load %arg4[%c0_34, %c0_35, %c24] : memref<1x32x64xbf16, #tpu.memory_space<vmem>>, vector<1x32x8xbf16>
    %88 = vector.shape_cast %87 : vector<1x32x8xbf16> to vector<32x8xbf16>
    %cst_36 = arith.constant dense<0.000000e+00> : vector<8x8xf32>
    %89 = tpu.matmul %1, %88, %cst_36 {dimension_numbers = #tpu.dot_dimension_numbers<[1], [0], [0], [1], [0, 0, 1, 1], [], []>} : vector<8x32xbf16>, vector<32x8xbf16>, vector<8x8xf32> -> vector<8x8xf32>
    %90 = vector.extract_strided_slice %89 {offsets = [0, 0], sizes = [8, 4], strides = [1, 1]} : vector<8x8xf32> to vector<8x4xf32>
    %91 = vector.extract_strided_slice %89 {offsets = [0, 4], sizes = [8, 4], strides = [1, 1]} : vector<8x8xf32> to vector<8x4xf32>
    %92 = arith.mulf %90, %3 : vector<8x4xf32>
    %93 = arith.mulf %91, %5 : vector<8x4xf32>
    %94 = arith.subf %92, %93 : vector<8x4xf32>
    %95 = arith.mulf %91, %3 : vector<8x4xf32>
    %96 = arith.mulf %90, %5 : vector<8x4xf32>
    %97 = arith.addf %95, %96 : vector<8x4xf32>
    %98 = tpu.concatenate %94, %97 in 1 : vector<8x4xf32>, vector<8x4xf32> -> vector<8x8xf32>
    %c8_i32_37 = arith.constant 8 : i32
    %99 = arith.muli %arg2, %c8_i32_37 : i32
    %c3_i32 = arith.constant 3 : i32
    %100 = arith.addi %99, %c3_i32 : i32
    %c6_i32_38 = arith.constant 6 : i32
    %101 = arith.cmpi slt, %100, %c6_i32_38 : i32
    %102 = arith.extui %101 : i1 to i32
    %103 = arith.sitofp %102 : i32 to f32
    %104 = vector.broadcast %103 : f32 to vector<8x8xf32>
    %105 = arith.mulf %104, %98 : vector<8x8xf32>
    %cst_39 = arith.constant 1.000000e+00 : f32
    %106 = arith.subf %cst_39, %103 : f32
    %107 = vector.broadcast %106 : f32 to vector<8x8xf32>
    %108 = arith.mulf %107, %89 : vector<8x8xf32>
    %109 = arith.addf %105, %108 : vector<8x8xf32>
    %110 = arith.truncf %109 : vector<8x8xf32> to vector<8x8xbf16>
    %c0_40 = arith.constant 0 : index
    %c3 = arith.constant 3 : index
    %c0_41 = arith.constant 0 : index
    %c0_42 = arith.constant 0 : index
    %111 = vector.load %arg7[%c0_40, %c3, %c0_41, %c0_42] : memref<1x8x8x8xbf16, #tpu.memory_space<vmem>>, vector<1x1x8x8xbf16>
    %112 = vector.shape_cast %111 : vector<1x1x8x8xbf16> to vector<8x8xbf16>
    %113 = vector.shape_cast %110 : vector<8x8xbf16> to vector<1x1x8x8xbf16>
    tpu.vector_store %arg7[%c0_40, %c3, %c0_41, %c0_42], %113 {strides = array<i32>} : memref<1x8x8x8xbf16, #tpu.memory_space<vmem>>, vector<1x1x8x8xbf16>,
    %c0_43 = arith.constant 0 : index
    %c0_44 = arith.constant 0 : index
    %c32 = arith.constant 32 : index
    %114 = vector.load %arg4[%c0_43, %c0_44, %c32] : memref<1x32x64xbf16, #tpu.memory_space<vmem>>, vector<1x32x8xbf16>
    %115 = vector.shape_cast %114 : vector<1x32x8xbf16> to vector<32x8xbf16>
    %cst_45 = arith.constant dense<0.000000e+00> : vector<8x8xf32>
    %116 = tpu.matmul %1, %115, %cst_45 {dimension_numbers = #tpu.dot_dimension_numbers<[1], [0], [0], [1], [0, 0, 1, 1], [], []>} : vector<8x32xbf16>, vector<32x8xbf16>, vector<8x8xf32> -> vector<8x8xf32>
    %117 = vector.extract_strided_slice %116 {offsets = [0, 0], sizes = [8, 4], strides = [1, 1]} : vector<8x8xf32> to vector<8x4xf32>
    %118 = vector.extract_strided_slice %116 {offsets = [0, 4], sizes = [8, 4], strides = [1, 1]} : vector<8x8xf32> to vector<8x4xf32>
    %119 = arith.mulf %117, %3 : vector<8x4xf32>
    %120 = arith.mulf %118, %5 : vector<8x4xf32>
    %121 = arith.subf %119, %120 : vector<8x4xf32>
    %122 = arith.mulf %118, %3 : vector<8x4xf32>
    %123 = arith.mulf %117, %5 : vector<8x4xf32>
    %124 = arith.addf %122, %123 : vector<8x4xf32>
    %125 = tpu.concatenate %121, %124 in 1 : vector<8x4xf32>, vector<8x4xf32> -> vector<8x8xf32>
    %c8_i32_46 = arith.constant 8 : i32
    %126 = arith.muli %arg2, %c8_i32_46 : i32
    %c4_i32 = arith.constant 4 : i32
    %127 = arith.addi %126, %c4_i32 : i32
    %c6_i32_47 = arith.constant 6 : i32
    %128 = arith.cmpi slt, %127, %c6_i32_47 : i32
    %129 = arith.extui %128 : i1 to i32
    %130 = arith.sitofp %129 : i32 to f32
    %131 = vector.broadcast %130 : f32 to vector<8x8xf32>
    %132 = arith.mulf %131, %125 : vector<8x8xf32>
    %cst_48 = arith.constant 1.000000e+00 : f32
    %133 = arith.subf %cst_48, %130 : f32
    %134 = vector.broadcast %133 : f32 to vector<8x8xf32>
    %135 = arith.mulf %134, %116 : vector<8x8xf32>
    %136 = arith.addf %132, %135 : vector<8x8xf32>
    %137 = arith.truncf %136 : vector<8x8xf32> to vector<8x8xbf16>
    %c0_49 = arith.constant 0 : index
    %c4 = arith.constant 4 : index
    %c0_50 = arith.constant 0 : index
    %c0_51 = arith.constant 0 : index
    %138 = vector.load %arg7[%c0_49, %c4, %c0_50, %c0_51] : memref<1x8x8x8xbf16, #tpu.memory_space<vmem>>, vector<1x1x8x8xbf16>
    %139 = vector.shape_cast %138 : vector<1x1x8x8xbf16> to vector<8x8xbf16>
    %140 = vector.shape_cast %137 : vector<8x8xbf16> to vector<1x1x8x8xbf16>
    tpu.vector_store %arg7[%c0_49, %c4, %c0_50, %c0_51], %140 {strides = array<i32>} : memref<1x8x8x8xbf16, #tpu.memory_space<vmem>>, vector<1x1x8x8xbf16>,
    %c0_52 = arith.constant 0 : index
    %c0_53 = arith.constant 0 : index
    %c40 = arith.constant 40 : index
    %141 = vector.load %arg4[%c0_52, %c0_53, %c40] : memref<1x32x64xbf16, #tpu.memory_space<vmem>>, vector<1x32x8xbf16>
    %142 = vector.shape_cast %141 : vector<1x32x8xbf16> to vector<32x8xbf16>
    %cst_54 = arith.constant dense<0.000000e+00> : vector<8x8xf32>
    %143 = tpu.matmul %1, %142, %cst_54 {dimension_numbers = #tpu.dot_dimension_numbers<[1], [0], [0], [1], [0, 0, 1, 1], [], []>} : vector<8x32xbf16>, vector<32x8xbf16>, vector<8x8xf32> -> vector<8x8xf32>
    %144 = vector.extract_strided_slice %143 {offsets = [0, 0], sizes = [8, 4], strides = [1, 1]} : vector<8x8xf32> to vector<8x4xf32>
    %145 = vector.extract_strided_slice %143 {offsets = [0, 4], sizes = [8, 4], strides = [1, 1]} : vector<8x8xf32> to vector<8x4xf32>
    %146 = arith.mulf %144, %3 : vector<8x4xf32>
    %147 = arith.mulf %145, %5 : vector<8x4xf32>
    %148 = arith.subf %146, %147 : vector<8x4xf32>
    %149 = arith.mulf %145, %3 : vector<8x4xf32>
    %150 = arith.mulf %144, %5 : vector<8x4xf32>
    %151 = arith.addf %149, %150 : vector<8x4xf32>
    %152 = tpu.concatenate %148, %151 in 1 : vector<8x4xf32>, vector<8x4xf32> -> vector<8x8xf32>
    %c8_i32_55 = arith.constant 8 : i32
    %153 = arith.muli %arg2, %c8_i32_55 : i32
    %c5_i32 = arith.constant 5 : i32
    %154 = arith.addi %153, %c5_i32 : i32
    %c6_i32_56 = arith.constant 6 : i32
    %155 = arith.cmpi slt, %154, %c6_i32_56 : i32
    %156 = arith.extui %155 : i1 to i32
    %157 = arith.sitofp %156 : i32 to f32
    %158 = vector.broadcast %157 : f32 to vector<8x8xf32>
    %159 = arith.mulf %158, %152 : vector<8x8xf32>
    %cst_57 = arith.constant 1.000000e+00 : f32
    %160 = arith.subf %cst_57, %157 : f32
    %161 = vector.broadcast %160 : f32 to vector<8x8xf32>
    %162 = arith.mulf %161, %143 : vector<8x8xf32>
    %163 = arith.addf %159, %162 : vector<8x8xf32>
    %164 = arith.truncf %163 : vector<8x8xf32> to vector<8x8xbf16>
    %c0_58 = arith.constant 0 : index
    %c5 = arith.constant 5 : index
    %c0_59 = arith.constant 0 : index
    %c0_60 = arith.constant 0 : index
    %165 = vector.load %arg7[%c0_58, %c5, %c0_59, %c0_60] : memref<1x8x8x8xbf16, #tpu.memory_space<vmem>>, vector<1x1x8x8xbf16>
    %166 = vector.shape_cast %165 : vector<1x1x8x8xbf16> to vector<8x8xbf16>
    %167 = vector.shape_cast %164 : vector<8x8xbf16> to vector<1x1x8x8xbf16>
    tpu.vector_store %arg7[%c0_58, %c5, %c0_59, %c0_60], %167 {strides = array<i32>} : memref<1x8x8x8xbf16, #tpu.memory_space<vmem>>, vector<1x1x8x8xbf16>,
    %c0_61 = arith.constant 0 : index
    %c0_62 = arith.constant 0 : index
    %c48 = arith.constant 48 : index
    %168 = vector.load %arg4[%c0_61, %c0_62, %c48] : memref<1x32x64xbf16, #tpu.memory_space<vmem>>, vector<1x32x8xbf16>
    %169 = vector.shape_cast %168 : vector<1x32x8xbf16> to vector<32x8xbf16>
    %cst_63 = arith.constant dense<0.000000e+00> : vector<8x8xf32>
    %170 = tpu.matmul %1, %169, %cst_63 {dimension_numbers = #tpu.dot_dimension_numbers<[1], [0], [0], [1], [0, 0, 1, 1], [], []>} : vector<8x32xbf16>, vector<32x8xbf16>, vector<8x8xf32> -> vector<8x8xf32>
    %171 = vector.extract_strided_slice %170 {offsets = [0, 0], sizes = [8, 4], strides = [1, 1]} : vector<8x8xf32> to vector<8x4xf32>
    %172 = vector.extract_strided_slice %170 {offsets = [0, 4], sizes = [8, 4], strides = [1, 1]} : vector<8x8xf32> to vector<8x4xf32>
    %173 = arith.mulf %171, %3 : vector<8x4xf32>
    %174 = arith.mulf %172, %5 : vector<8x4xf32>
    %175 = arith.subf %173, %174 : vector<8x4xf32>
    %176 = arith.mulf %172, %3 : vector<8x4xf32>
    %177 = arith.mulf %171, %5 : vector<8x4xf32>
    %178 = arith.addf %176, %177 : vector<8x4xf32>
    %179 = tpu.concatenate %175, %178 in 1 : vector<8x4xf32>, vector<8x4xf32> -> vector<8x8xf32>
    %c8_i32_64 = arith.constant 8 : i32
    %180 = arith.muli %arg2, %c8_i32_64 : i32
    %c6_i32_65 = arith.constant 6 : i32
    %181 = arith.addi %180, %c6_i32_65 : i32
    %c6_i32_66 = arith.constant 6 : i32
    %182 = arith.cmpi slt, %181, %c6_i32_66 : i32
    %183 = arith.extui %182 : i1 to i32
    %184 = arith.sitofp %183 : i32 to f32
    %185 = vector.broadcast %184 : f32 to vector<8x8xf32>
    %186 = arith.mulf %185, %179 : vector<8x8xf32>
    %cst_67 = arith.constant 1.000000e+00 : f32
    %187 = arith.subf %cst_67, %184 : f32
    %188 = vector.broadcast %187 : f32 to vector<8x8xf32>
    %189 = arith.mulf %188, %170 : vector<8x8xf32>
    %190 = arith.addf %186, %189 : vector<8x8xf32>
    %191 = arith.truncf %190 : vector<8x8xf32> to vector<8x8xbf16>
    %c0_68 = arith.constant 0 : index
    %c6 = arith.constant 6 : index
    %c0_69 = arith.constant 0 : index
    %c0_70 = arith.constant 0 : index
    %192 = vector.load %arg7[%c0_68, %c6, %c0_69, %c0_70] : memref<1x8x8x8xbf16, #tpu.memory_space<vmem>>, vector<1x1x8x8xbf16>
    %193 = vector.shape_cast %192 : vector<1x1x8x8xbf16> to vector<8x8xbf16>
    %194 = vector.shape_cast %191 : vector<8x8xbf16> to vector<1x1x8x8xbf16>
    tpu.vector_store %arg7[%c0_68, %c6, %c0_69, %c0_70], %194 {strides = array<i32>} : memref<1x8x8x8xbf16, #tpu.memory_space<vmem>>, vector<1x1x8x8xbf16>,
    %c0_71 = arith.constant 0 : index
    %c0_72 = arith.constant 0 : index
    %c56 = arith.constant 56 : index
    %195 = vector.load %arg4[%c0_71, %c0_72, %c56] : memref<1x32x64xbf16, #tpu.memory_space<vmem>>, vector<1x32x8xbf16>
    %196 = vector.shape_cast %195 : vector<1x32x8xbf16> to vector<32x8xbf16>
    %cst_73 = arith.constant dense<0.000000e+00> : vector<8x8xf32>
    %197 = tpu.matmul %1, %196, %cst_73 {dimension_numbers = #tpu.dot_dimension_numbers<[1], [0], [0], [1], [0, 0, 1, 1], [], []>} : vector<8x32xbf16>, vector<32x8xbf16>, vector<8x8xf32> -> vector<8x8xf32>
    %198 = vector.extract_strided_slice %197 {offsets = [0, 0], sizes = [8, 4], strides = [1, 1]} : vector<8x8xf32> to vector<8x4xf32>
    %199 = vector.extract_strided_slice %197 {offsets = [0, 4], sizes = [8, 4], strides = [1, 1]} : vector<8x8xf32> to vector<8x4xf32>
    %200 = arith.mulf %198, %3 : vector<8x4xf32>
    %201 = arith.mulf %199, %5 : vector<8x4xf32>
    %202 = arith.subf %200, %201 : vector<8x4xf32>
    %203 = arith.mulf %199, %3 : vector<8x4xf32>
    %204 = arith.mulf %198, %5 : vector<8x4xf32>
    %205 = arith.addf %203, %204 : vector<8x4xf32>
    %206 = tpu.concatenate %202, %205 in 1 : vector<8x4xf32>, vector<8x4xf32> -> vector<8x8xf32>
    %c8_i32_74 = arith.constant 8 : i32
    %207 = arith.muli %arg2, %c8_i32_74 : i32
    %c7_i32 = arith.constant 7 : i32
    %208 = arith.addi %207, %c7_i32 : i32
    %c6_i32_75 = arith.constant 6 : i32
    %209 = arith.cmpi slt, %208, %c6_i32_75 : i32
    %210 = arith.extui %209 : i1 to i32
    %211 = arith.sitofp %210 : i32 to f32
    %212 = vector.broadcast %211 : f32 to vector<8x8xf32>
    %213 = arith.mulf %212, %206 : vector<8x8xf32>
    %cst_76 = arith.constant 1.000000e+00 : f32
    %214 = arith.subf %cst_76, %211 : f32
    %215 = vector.broadcast %214 : f32 to vector<8x8xf32>
    %216 = arith.mulf %215, %197 : vector<8x8xf32>
    %217 = arith.addf %213, %216 : vector<8x8xf32>
    %218 = arith.truncf %217 : vector<8x8xf32> to vector<8x8xbf16>
    %c0_77 = arith.constant 0 : index
    %c7 = arith.constant 7 : index
    %c0_78 = arith.constant 0 : index
    %c0_79 = arith.constant 0 : index
    %219 = vector.load %arg7[%c0_77, %c7, %c0_78, %c0_79] : memref<1x8x8x8xbf16, #tpu.memory_space<vmem>>, vector<1x1x8x8xbf16>
    %220 = vector.shape_cast %219 : vector<1x1x8x8xbf16> to vector<8x8xbf16>
    %221 = vector.shape_cast %218 : vector<8x8xbf16> to vector<1x1x8x8xbf16>
    tpu.vector_store %arg7[%c0_77, %c7, %c0_78, %c0_79], %221 {strides = array<i32>} : memref<1x8x8x8xbf16, #tpu.memory_space<vmem>>, vector<1x1x8x8xbf16>,
    return
  }
  func.func @transform_0(%arg0: i32, %arg1: i32, %arg2: i32) -> (i32, i32, i32) {
    %c0_i32 = arith.constant 0 : i32
    %c0_i32_0 = arith.constant 0 : i32
    return %arg0, %arg1, %c0_i32 : i32, i32, i32
  }
  func.func @transform_1(%arg0: i32, %arg1: i32, %arg2: i32) -> (i32, i32, i32) {
    %c0_i32 = arith.constant 0 : i32
    %c0_i32_0 = arith.constant 0 : i32
    %c0_i32_1 = arith.constant 0 : i32
    return %arg2, %c0_i32, %c0_i32_0 : i32, i32, i32
  }
  func.func @transform_2(%arg0: i32, %arg1: i32, %arg2: i32) -> (i32, i32, i32) {
    %c0_i32 = arith.constant 0 : i32
    %c0_i32_0 = arith.constant 0 : i32
    return %arg0, %arg1, %c0_i32 : i32, i32, i32
  }
  func.func @transform_3(%arg0: i32, %arg1: i32, %arg2: i32) -> (i32, i32, i32) {
    %c0_i32 = arith.constant 0 : i32
    %c0_i32_0 = arith.constant 0 : i32
    return %arg0, %arg1, %c0_i32 : i32, i32, i32
  }
  func.func @transform_4(%arg0: i32, %arg1: i32, %arg2: i32) -> (i32, i32, i32, i32) {
    %c0_i32 = arith.constant 0 : i32
    %c0_i32_0 = arith.constant 0 : i32
    return %arg0, %arg2, %arg1, %c0_i32 : i32, i32, i32, i32
  }
}

</mosaic_0001>

<llo_original>
// kernel: tpu_custom_call.1
$region0: #{tpu_custom_call.1}
  #allocation0 [shape = 'u32[]', space=smem, size = 0x4, offset = 0x4, fixed_abs, tag = 'smem constant byte address 0x4 - core index']
  #allocation1 [shape = 'u32[144,128]{1,0:T(1,128)}', space=vmem, size = 0x12000, scoped, tag = 'internal scratch']
  %s0 = inlined_call_operand.vmem [shape: bf16[2,8,32], index: 0, kind: input, shape index: {}]
  %s1 = inlined_call_operand.vmem [shape: bf16[1,32,64], index: 1, kind: input, shape index: {}]
  %s2 = inlined_call_operand.vmem [shape: f32[2,8,4], index: 2, kind: input, shape index: {}]
  %s3 = inlined_call_operand.vmem [shape: f32[2,8,4], index: 3, kind: input, shape index: {}]
  %s4 = inlined_call_operand.hbm [shape: bf16[2,8,8,8], index: 4, kind: output, shape index: {}]
  %s5 = sld [smem:[#allocation0]]
  $region49: #{tpu_custom_call.1} parent=0
    _
  %s7 = ssub.s32 1, %s5
  %s8 = scalar_select 0, %s7, %s5
  $region1: #{tpu_custom_call.1} parent=0
    #allocation2 [shape = 'u8[32768]{0}', space=vmem, size = 0x8000, scoped, tag = 'output window, operand 0']
    #allocation3 [shape = 's32[2]{0}', space=sflag, size = 0x8, scoped, tag = 'scoped memory for tpu_custom_call.1']
    %9 = vsyncpa [#allocation3], 0
    %s10 = scalar_lea.sflag [#allocation3], 1
    %11 = vsyncpa %s10, 0
    loop: start=0, step=1, limit=4
    $region2: #{tpu_custom_call.1} parent=1 // loop_pre_header
      _
    $region3: #{tpu_custom_call.1} parent=1 // loop_header
      %s13 = sphi 0, %s17
      %p14 = scmp.ge.s32.totalorder %s13, 4
      %s20 = sphi 0, %s39
      %s21 = sphi 0, %s35
      %s22 = sphi 0, %s31
      %s23 = sphi 0, %s20
      %s24 = sphi 0, %s21
      %s25 = sphi 0, %s22
      %s26 = sphi 0, %s23
      %s27 = sphi 0, %s24
      %s28 = sphi 0, %s25
      %s44 = sphi 0, %s46
      %s47 = sphi 0, %s44
      %s48 = sphi 0, %s47
      %s64 = sphi 0, %s48
      %s70 = sphi 0, %s72
      %s73 = sphi 0, %s70
      %s74 = sphi 0, %s73
      %s90 = sphi 0, %s74
      %s98 = sphi 0, %s100
      %s101 = sphi 0, %s98
      %s102 = sphi 0, %s101
      %s118 = sphi 0, %s102
      %s126 = sphi 0, %s128
      %s129 = sphi 0, %s126
      %s130 = sphi 0, %s129
      %s146 = sphi 0, %s130
      %s156 = sphi 0, %s158
      %s159 = sphi 0, %s156
      %s160 = sphi 0, %s159
      %s176 = sphi 0, %s160
    $region4: #{tpu_custom_call.1} parent=1 // loop_header_branch
      %16 = sbr.rel (%p14) target = $region8
    $region5: #{tpu_custom_call.1} parent=1 // loop_body
      %s18 = ssub.s32 %s13, 1
      %s19 = ssub.s32 %s13, 2
      %s29 = sadd.s32 1, %s22
      %p30 = scmp.ge.s32.totalorder %s29, 1
      %s31 = scalar_select %p30, 0, %s29
      %s32 = sadd.s32 1, %s21
      %s33 = scalar_select %p30, %s32, %s21
      %p34 = scmp.ge.s32.totalorder %s33, 1
      %s35 = scalar_select %p34, 0, %s33
      %s36 = sadd.s32 1, %s20
      %s37 = scalar_select %p34, %s36, %s20
      %p38 = scmp.ge.s32.totalorder %s37, 2
      %s39 = scalar_select %p38, 0, %s37
      %s40 = ssub.s32 %s20, %s39
      %s41 = ssub.s32 %s21, %s35
      %s42 = sor.u32 %s40, %s41
      %p43 = scmp.eq.s32.totalorder %s42, 0
      %s45 = sadd.s32 %s44, 1
      %s46 = scalar_select %p43, %s44, %s45
      %p49 = pneg %p43
      %p50 = scmp.eq.s32.totalorder %s13, 1
      %p51 = por %p49, %p50
      %p52 = scmp.ne.s32.totalorder %s44, %s47
      %p53 = scmp.eq.s32.totalorder %s13, 0
      %p54 = por %p52, %p53
      %p55 = scmp.ne.s32.totalorder %s44, %s47
      %p56 = scmp.eq.s32.totalorder %s18, 1
      %p57 = por %p55, %p56
      %p58 = scmp.ne.s32.totalorder %s47, %s48
      %p59 = scmp.eq.s32.totalorder %s18, 0
      %p60 = por %p58, %p59
      %p61 = scmp.ne.s32.totalorder %s47, %s48
      %p62 = scmp.eq.s32.totalorder %s19, 1
      %p63 = por %p61, %p62
      %p65 = scmp.ne.s32.totalorder %s48, %s64
      %p66 = scmp.eq.s32.totalorder %s19, 0
      %p67 = por %p65, %p66
      %s68 = ssub.s32 %s22, %s31
      %p69 = scmp.eq.s32.totalorder %s68, 0
      %s71 = sadd.s32 %s70, 1
      %s72 = scalar_select %p69, %s70, %s71
      %p75 = pneg %p69
      %p76 = scmp.eq.s32.totalorder %s13, 1
      %p77 = por %p75, %p76
      %p78 = scmp.ne.s32.totalorder %s70, %s73
      %p79 = scmp.eq.s32.totalorder %s13, 0
      %p80 = por %p78, %p79
      %p81 = scmp.ne.s32.totalorder %s70, %s73
      %p82 = scmp.eq.s32.totalorder %s18, 1
      %p83 = por %p81, %p82
      %p84 = scmp.ne.s32.totalorder %s73, %s74
      %p85 = scmp.eq.s32.totalorder %s18, 0
      %p86 = por %p84, %p85
      %p87 = scmp.ne.s32.totalorder %s73, %s74
      %p88 = scmp.eq.s32.totalorder %s19, 1
      %p89 = por %p87, %p88
      %p91 = scmp.ne.s32.totalorder %s74, %s90
      %p92 = scmp.eq.s32.totalorder %s19, 0
      %p93 = por %p91, %p92
      %s94 = ssub.s32 %s20, %s39
      %s95 = ssub.s32 %s21, %s35
      %s96 = sor.u32 %s94, %s95
      %p97 = scmp.eq.s32.totalorder %s96, 0
      %s99 = sadd.s32 %s98, 1
      %s100 = scalar_select %p97, %s98, %s99
      %p103 = pneg %p97
      %p104 = scmp.eq.s32.totalorder %s13, 1
      %p105 = por %p103, %p104
      %p106 = scmp.ne.s32.totalorder %s98, %s101
      %p107 = scmp.eq.s32.totalorder %s13, 0
      %p108 = por %p106, %p107
      %p109 = scmp.ne.s32.totalorder %s98, %s101
      %p110 = scmp.eq.s32.totalorder %s18, 1
      %p111 = por %p109, %p110
      %p112 = scmp.ne.s32.totalorder %s101, %s102
      %p113 = scmp.eq.s32.totalorder %s18, 0
      %p114 = por %p112, %p113
      %p115 = scmp.ne.s32.totalorder %s101, %s102
      %p116 = scmp.eq.s32.totalorder %s19, 1
      %p117 = por %p115, %p116
      %p119 = scmp.ne.s32.totalorder %s102, %s118
      %p120 = scmp.eq.s32.totalorder %s19, 0
      %p121 = por %p119, %p120
      %s122 = ssub.s32 %s20, %s39
      %s123 = ssub.s32 %s21, %s35
      %s124 = sor.u32 %s122, %s123
      %p125 = scmp.eq.s32.totalorder %s124, 0
      %s127 = sadd.s32 %s126, 1
      %s128 = scalar_select %p125, %s126, %s127
      %p131 = pneg %p125
      %p132 = scmp.eq.s32.totalorder %s13, 1
      %p133 = por %p131, %p132
      %p134 = scmp.ne.s32.totalorder %s126, %s129
      %p135 = scmp.eq.s32.totalorder %s13, 0
      %p136 = por %p134, %p135
      %p137 = scmp.ne.s32.totalorder %s126, %s129
      %p138 = scmp.eq.s32.totalorder %s18, 1
      %p139 = por %p137, %p138
      %p140 = scmp.ne.s32.totalorder %s129, %s130
      %p141 = scmp.eq.s32.totalorder %s18, 0
      %p142 = por %p140, %p141
      %p143 = scmp.ne.s32.totalorder %s129, %s130
      %p144 = scmp.eq.s32.totalorder %s19, 1
      %p145 = por %p143, %p144
      %p147 = scmp.ne.s32.totalorder %s130, %s146
      %p148 = scmp.eq.s32.totalorder %s19, 0
      %p149 = por %p147, %p148
      %s150 = ssub.s32 %s20, %s39
      %s151 = ssub.s32 %s22, %s31
      %s152 = sor.u32 %s150, %s151
      %s153 = ssub.s32 %s21, %s35
      %s154 = sor.u32 %s152, %s153
      %p155 = scmp.eq.s32.totalorder %s154, 0
      %s157 = sadd.s32 %s156, 1
      %s158 = scalar_select %p155, %s156, %s157
      %p161 = pneg %p155
      %p162 = scmp.eq.s32.totalorder %s13, 1
      %p163 = por %p161, %p162
      %p164 = scmp.ne.s32.totalorder %s156, %s159
      %p165 = scmp.eq.s32.totalorder %s13, 0
      %p166 = por %p164, %p165
      %p167 = scmp.ne.s32.totalorder %s156, %s159
      %p168 = scmp.eq.s32.totalorder %s18, 1
      %p169 = por %p167, %p168
      %p170 = scmp.ne.s32.totalorder %s159, %s160
      %p171 = scmp.eq.s32.totalorder %s18, 0
      %p172 = por %p170, %p171
      %p173 = scmp.ne.s32.totalorder %s159, %s160
      %p174 = scmp.eq.s32.totalorder %s19, 1
      %p175 = por %p173, %p174
      %p177 = scmp.ne.s32.totalorder %s160, %s176
      %p178 = scmp.eq.s32.totalorder %s19, 0
      %p179 = por %p177, %p178
      %p180 = scmp.le.s32.totalorder 1, %s13
      %p181 = scmp.lt.s32.totalorder %s13, 3
      %p182 = pnand %p180, %p181
      %p183 = pneg %p182
      // Predicated region
      $region9: #{tpu_custom_call.1} parent=5 // pred_check
        _
      $region10: #{tpu_custom_call.1} parent=5 // pred_check_branch
        %185 = sbr.rel (%p182) target = $region12
      $region11: #{tpu_custom_call.1} parent=5 // pred_region
        %s186 = ssub.s32 %s13, 1
        // Predicated region
        $region13: #{tpu_custom_call.1} parent=11 // pred_check
          %p187 = pneg %p86
        $region14: #{tpu_custom_call.1} parent=11 // pred_check_branch
          %189 = sbr.rel (%p187) target = $region16
        $region15: #{tpu_custom_call.1} parent=11 // pred_region
          %p190 = scmp.lt.s32.totalorder %s25, 0
          %s191 = scalar_select %p190, %s25, 0
          %s192 = smul.addr %s191, 4
          %s193 = smul.addr %s192, 4
          %s194 = scalar_lea.vmem %s1, %s193
        $region16: #{tpu_custom_call.1} parent=11 // pred_fallthru
          _
      $region12: #{tpu_custom_call.1} parent=5 // pred_fallthru
        _
      %p195 = scmp.lt.s32.totalorder %s13, 2
      // Predicated region
      $region17: #{tpu_custom_call.1} parent=5 // pred_check
        %p196 = pneg %p195
      $region18: #{tpu_custom_call.1} parent=5 // pred_check_branch
        %198 = sbr.rel (%p196) target = $region20
      $region19: #{tpu_custom_call.1} parent=5 // pred_region
        // Predicated region
        $region21: #{tpu_custom_call.1} parent=19 // pred_check
          %p199 = pneg %p54
        $region22: #{tpu_custom_call.1} parent=19 // pred_check_branch
          %201 = sbr.rel (%p199) target = $region24
        $region23: #{tpu_custom_call.1} parent=19 // pred_region
          %p202 = scmp.lt.s32.totalorder %s20, 1
          %s203 = scalar_select %p202, %s20, 1
          %p204 = scmp.lt.s32.totalorder %s21, 0
          %s205 = scalar_select %p204, %s21, 0
          %s206 = sadd.s32 %s205, %s203
          %s207 = smul.addr %s206, 4
          %s208 = scalar_lea.vmem %s0, %s207
        $region24: #{tpu_custom_call.1} parent=19 // pred_fallthru
          _
        // Predicated region
        $region25: #{tpu_custom_call.1} parent=19 // pred_check
          %p209 = pneg %p108
        $region26: #{tpu_custom_call.1} parent=19 // pred_check_branch
          %211 = sbr.rel (%p209) target = $region28
        $region27: #{tpu_custom_call.1} parent=19 // pred_region
          %p212 = scmp.lt.s32.totalorder %s20, 1
          %s213 = scalar_select %p212, %s20, 1
          %p214 = scmp.lt.s32.totalorder %s21, 0
          %s215 = scalar_select %p214, %s21, 0
          %s216 = sadd.s32 %s215, %s213
          %s217 = smul.addr %s216, 8
          %s218 = scalar_lea.vmem %s2, %s217
        $region28: #{tpu_custom_call.1} parent=19 // pred_fallthru
          _
        // Predicated region
        $region29: #{tpu_custom_call.1} parent=19 // pred_check
          %p219 = pneg %p136
        $region30: #{tpu_custom_call.1} parent=19 // pred_check_branch
          %221 = sbr.rel (%p219) target = $region32
        $region31: #{tpu_custom_call.1} parent=19 // pred_region
          %p222 = scmp.lt.s32.totalorder %s20, 1
          %s223 = scalar_select %p222, %s20, 1
          %p224 = scmp.lt.s32.totalorder %s21, 0
          %s225 = scalar_select %p224, %s21, 0
          %s226 = sadd.s32 %s225, %s223
          %s227 = smul.addr %s226, 8
          %s228 = scalar_lea.vmem %s3, %s227
        $region32: #{tpu_custom_call.1} parent=19 // pred_fallthru
          _
      $region20: #{tpu_custom_call.1} parent=5 // pred_fallthru
        _
      %p229 = scmp.le.s32.totalorder 1, %s13
      %p230 = scmp.lt.s32.totalorder %s13, 3
      %p231 = pnand %p229, %p230
      %p232 = pneg %p231
      // Predicated region
      $region33: #{tpu_custom_call.1} parent=5 // pred_check
        _
      $region34: #{tpu_custom_call.1} parent=5 // pred_check_branch
        %234 = sbr.rel (%p231) target = $region36
      $region35: #{tpu_custom_call.1} parent=5 // pred_region
        %s235 = ssub.s32 %s13, 1
        %p236 = scmp.lt.s32.totalorder %s23, 1
        %s237 = scalar_select %p236, %s23, 1
        %p238 = scmp.lt.s32.totalorder %s24, 0
        %s239 = scalar_select %p238, %s24, 0
        %s240 = sadd.s32 %s239, %s237
        %s241 = smul.addr %s240, 4
        %s242 = scalar_lea.vmem %s0, %s241
        %p243 = pneg %p60
        %p244 = pneg %p57
        %p245 = scmp.lt.s32.totalorder %s25, 0
        %s246 = scalar_select %p245, %s25, 0
        %s247 = smul.addr %s246, 4
        %s248 = smul.addr %s247, 4
        %s249 = scalar_lea.vmem %s1, %s248
        %p250 = pneg %p86
        %p251 = pneg %p83
        %p252 = scmp.lt.s32.totalorder %s23, 1
        %s253 = scalar_select %p252, %s23, 1
        %p254 = scmp.lt.s32.totalorder %s24, 0
        %s255 = scalar_select %p254, %s24, 0
        %s256 = sadd.s32 %s255, %s253
        %s257 = smul.addr %s256, 8
        %s258 = scalar_lea.vmem %s2, %s257
        %p259 = pneg %p114
        %p260 = pneg %p111
        %p261 = scmp.lt.s32.totalorder %s23, 1
        %s262 = scalar_select %p261, %s23, 1
        %p263 = scmp.lt.s32.totalorder %s24, 0
        %s264 = scalar_select %p263, %s24, 0
        %s265 = sadd.s32 %s264, %s262
        %s266 = smul.addr %s265, 8
        %s267 = scalar_lea.vmem %s3, %s266
        %p268 = pneg %p142
        %p269 = pneg %p139
        %p270 = pneg %p172
        %p271 = pneg %p169
        %s272 = sand.u32 %s159, 1
        %s273 = scalar_lea.sflag [#allocation3], %s272
        %s274 = sand.u32 %s159, 1
        %s275 = smul.addr %s274, 32
        %s276 = scalar_lea.vmem [#allocation2], %s275
        %p277 = scmp.lt.s32.totalorder %s23, 1
        %s278 = scalar_select %p277, %s23, 1
        %p279 = scmp.lt.s32.totalorder %s24, 0
        %s280 = scalar_select %p279, %s24, 0
        %s281 = sadd.s32 %s280, %s278
        %s282 = smul.addr %s281, 4
        %s283 = scalar_lea.vmem %s0, %s282
        %p284 = scmp.lt.s32.totalorder %s25, 0
        %s285 = scalar_select %p284, %s25, 0
        %s286 = smul.addr %s285, 4
        %s287 = smul.addr %s286, 4
        %s288 = scalar_lea.vmem %s1, %s287
        %p289 = scmp.lt.s32.totalorder %s23, 1
        %s290 = scalar_select %p289, %s23, 1
        %p291 = scmp.lt.s32.totalorder %s24, 0
        %s292 = scalar_select %p291, %s24, 0
        %s293 = sadd.s32 %s292, %s290
        %s294 = smul.addr %s293, 8
        %s295 = scalar_lea.vmem %s2, %s294
        %p296 = scmp.lt.s32.totalorder %s23, 1
        %s297 = scalar_select %p296, %s23, 1
        %p298 = scmp.lt.s32.totalorder %s24, 0
        %s299 = scalar_select %p298, %s24, 0
        %s300 = sadd.s32 %s299, %s297
        %s301 = smul.addr %s300, 8
        %s302 = scalar_lea.vmem %s3, %s301
        %s303 = smul.u32 8, %s25
        %v305 = vld [vmem:[%s283] sm:$0xf]
        %v306 = vld [vmem:[%s295] sm:$0xff]
        %v307 = vld [vmem:[%s302] sm:$0xff]
        %v308 = vld [vmem:[%s288] sm:$0xf]
        %v309 = vld [vmem:[%s288 + $0x4] sm:$0xf]
        %v310 = vld [vmem:[%s288 + $0x8] sm:$0xf]
        %v311 = vld [vmem:[%s288 + $0xc] sm:$0xf]
        %v316 = vunpack.c.l.b16 %v308
        %v317 = vunpack.c.l.b16 %v309
        %v318 = vunpack.c.l.b16 %v310
        %v319 = vunpack.c.l.b16 %v311
        %v320 = vpack.c.b16 %v317, %v316
        %v321 = vpack.c.b16 %v319, %v318
        %vm324 = vcmask 261120
        %v326 = vsel %vm324, %v305, 0
        %328 = vmatprep.subr.bf16.mxu0 0
        %329 = vmatpush1.bf16.msra.mxu0 %v320
        %330 = vmatprep.subr.bf16.mxu0 0
        %331 = vmatpush1.bf16.msra.mxu0 %v321
        %332 = vmatprep.subr.bf16.mxu0 0
        %333 = vmatpush1.bf16.msra.mxu0 0
        %334 = vmatprep.subr.bf16.mxu0 0
        %335 = vmatpush1.bf16.msra.mxu0 0
        %336 = vmatprep.subr.bf16.mxu0 0
        %337 = vmatpush1.bf16.msra.mxu0 0
        %338 = vmatprep.subr.bf16.mxu0 0
        %339 = vmatpush1.bf16.msra.mxu0 0
        %340 = vmatprep.subr.bf16.mxu0 0
        %341 = vmatpush1.bf16.msra.mxu0 0
        %342 = vmatprep.subr.bf16.mxu0 0
        %343 = vmatpush1.bf16.msra.mxu0 0
        %344 = vmatprep.subr.bf16.mxu0 0
        %345 = vmatpush1.bf16.msra.mxu0 0
        %346 = vmatprep.subr.bf16.mxu0 0
        %347 = vmatpush1.bf16.msra.mxu0 0
        %348 = vmatprep.subr.bf16.mxu0 0
        %349 = vmatpush1.bf16.msra.mxu0 0
        %350 = vmatprep.subr.bf16.mxu0 0
        %351 = vmatpush1.bf16.msra.mxu0 0
        %352 = vmatprep.subr.bf16.mxu0 0
        %353 = vmatpush1.bf16.msra.mxu0 0
        %354 = vmatprep.subr.bf16.mxu0 0
        %355 = vmatpush1.bf16.msra.mxu0 0
        %356 = vmatprep.subr.bf16.mxu0 0
        %357 = vmatpush1.bf16.msra.mxu0 0
        %358 = vmatprep.subr.bf16.mxu0 0
        %359 = vmatpush1.bf16.msra.mxu0 0
        %360 = vmatprep.mubr.bf16.mxu0 0
        %361 = vmatmul.mubr.bf16.gmra.mrb[0].mxu0 %v326
        %v362 = vpop.f32.mrb[0].mxu0
        %v363 = vadd.f32 0.0, %v362
        %v364 = vpop.f32.mrb[0].mxu0
        %v365 = vpop.f32.mrb[0].mxu0
        %v366 = vpop.f32.mrb[0].mxu0
        %367 = vdwg.mxu0
        %v368 = vmul.f32 %v363, %v306
        %370 = vrot.lane.b32.xlu0 %v307, 4
        %v371 = vpop.permute.xlu0 %370
        %v373 = vmul.f32 %v363, %v371
        %375 = vrot.lane.b32.xlu0 %v373, 124
        %v376 = vpop.permute.xlu0 %375
        %v378 = vsub.f32 %v368, %v376
        %380 = vrot.lane.b32.xlu0 %v306, 4
        %v381 = vpop.permute.xlu0 %380
        %v383 = vmul.f32 %v363, %v381
        %v384 = vmul.f32 %v363, %v307
        %386 = vrot.lane.b32.xlu0 %v384, 4
        %v387 = vpop.permute.xlu0 %386
        %v389 = vadd.f32 %v383, %v387
        %vm390 = vcmask 31744
        %v391 = vsel %vm390, %v378, %v389
        %s392 = smul.u32 %s25, 8
        %p393 = scmp.lt.s32.totalorder %s392, 6
        %s394 = scalar_select %p393, 1, 0
        %s395 = scvt.s32.f32 %s394
        %v396 = vstv %s395
        %v397 = vmul.f32 %v396, %v391
        %s398 = ssub.f32 1.0, %s395
        %v399 = vstv %s398
        %v400 = vmul.f32 %v399, %v363
        %v401 = vadd.f32 %v397, %v400
        %v402 = vpack.c.bf16 %v401, %v401
        %vm403 = vcmask 60416
        %404 = vst.msk [vmem:[%s276] sm:$0xf] %vm403, %v402
        %v405 = vld [vmem:[%s288] sm:$0xf]
        %v406 = vld [vmem:[%s288 + $0x4] sm:$0xf]
        %v407 = vld [vmem:[%s288 + $0x8] sm:$0xf]
        %v408 = vld [vmem:[%s288 + $0xc] sm:$0xf]
        %v413 = vunpack.c.l.b16 %v405
        %v414 = vunpack.c.l.b16 %v406
        %v415 = vunpack.c.l.b16 %v407
        %v416 = vunpack.c.l.b16 %v408
        %v417 = vpack.c.b16 %v414, %v413
        %v418 = vpack.c.b16 %v416, %v415
        %419 = vrot.lane.b32.xlu0 %v417, 120
        %v420 = vpop.permute.xlu0 %419
        %421 = vrot.lane.b32.xlu0 %v418, 120
        %v422 = vpop.permute.xlu0 %421
        %425 = vmatprep.subr.bf16.mxu0 0
        %426 = vmatpush1.bf16.msra.mxu0 %v420
        %427 = vmatprep.subr.bf16.mxu0 0
        %428 = vmatpush1.bf16.msra.mxu0 %v422
        %429 = vmatprep.subr.bf16.mxu0 0
        %430 = vmatpush1.bf16.msra.mxu0 0
        %431 = vmatprep.subr.bf16.mxu0 0
        %432 = vmatpush1.bf16.msra.mxu0 0
        %433 = vmatprep.subr.bf16.mxu0 0
        %434 = vmatpush1.bf16.msra.mxu0 0
        %435 = vmatprep.subr.bf16.mxu0 0
        %436 = vmatpush1.bf16.msra.mxu0 0
        %437 = vmatprep.subr.bf16.mxu0 0
        %438 = vmatpush1.bf16.msra.mxu0 0
        %439 = vmatprep.subr.bf16.mxu0 0
        %440 = vmatpush1.bf16.msra.mxu0 0
        %441 = vmatprep.subr.bf16.mxu0 0
        %442 = vmatpush1.bf16.msra.mxu0 0
        %443 = vmatprep.subr.bf16.mxu0 0
        %444 = vmatpush1.bf16.msra.mxu0 0
        %445 = vmatprep.subr.bf16.mxu0 0
        %446 = vmatpush1.bf16.msra.mxu0 0
        %447 = vmatprep.subr.bf16.mxu0 0
        %448 = vmatpush1.bf16.msra.mxu0 0
        %449 = vmatprep.subr.bf16.mxu0 0
        %450 = vmatpush1.bf16.msra.mxu0 0
        %451 = vmatprep.subr.bf16.mxu0 0
        %452 = vmatpush1.bf16.msra.mxu0 0
        %453 = vmatprep.subr.bf16.mxu0 0
        %454 = vmatpush1.bf16.msra.mxu0 0
        %455 = vmatprep.subr.bf16.mxu0 0
        %456 = vmatpush1.bf16.msra.mxu0 0
        %457 = vmatprep.mubr.bf16.mxu0 0
        %458 = vmatmul.mubr.bf16.gmra.mrb[0].mxu0 %v326
        %v459 = vpop.f32.mrb[0].mxu0
        %v460 = vadd.f32 0.0, %v459
        %v461 = vpop.f32.mrb[0].mxu0
        %v462 = vpop.f32.mrb[0].mxu0
        %v463 = vpop.f32.mrb[0].mxu0
        %464 = vdwg.mxu0
        %v465 = vmul.f32 %v460, %v306
        %v466 = vmul.f32 %v460, %v371
        %468 = vrot.lane.b32.xlu0 %v466, 124
        %v469 = vpop.permute.xlu0 %468
        %v471 = vsub.f32 %v465, %v469
        %v472 = vmul.f32 %v460, %v381
        %v473 = vmul.f32 %v460, %v307
        %475 = vrot.lane.b32.xlu0 %v473, 4
        %v476 = vpop.permute.xlu0 %475
        %v478 = vadd.f32 %v472, %v476
        %v479 = vsel %vm390, %v471, %v478
        %s480 = sadd.s32 %s392, 1
        %p481 = scmp.lt.s32.totalorder %s480, 6
        %s482 = scalar_select %p481, 1, 0
        %s483 = scvt.s32.f32 %s482
        %v484 = vstv %s483
        %v485 = vmul.f32 %v484, %v479
        %s486 = ssub.f32 1.0, %s483
        %v487 = vstv %s486
        %v488 = vmul.f32 %v487, %v460
        %v489 = vadd.f32 %v485, %v488
        %v490 = vpack.c.bf16 %v489, %v489
        %s491 = scalar_lea.vmem %s276, 4 [#allocation2]
        %492 = vst.msk [vmem:[%s491] sm:$0xf] %vm403, %v490
        %v493 = vld [vmem:[%s288] sm:$0xf]
        %v494 = vld [vmem:[%s288 + $0x4] sm:$0xf]
        %v495 = vld [vmem:[%s288 + $0x8] sm:$0xf]
        %v496 = vld [vmem:[%s288 + $0xc] sm:$0xf]
        %v501 = vunpack.c.l.b16 %v493
        %v502 = vunpack.c.l.b16 %v494
        %v503 = vunpack.c.l.b16 %v495
        %v504 = vunpack.c.l.b16 %v496
        %v505 = vpack.c.b16 %v502, %v501
        %v506 = vpack.c.b16 %v504, %v503
        %507 = vrot.lane.b32.xlu0 %v505, 112
        %v508 = vpop.permute.xlu0 %507
        %509 = vrot.lane.b32.xlu0 %v506, 112
        %v510 = vpop.permute.xlu0 %509
        %513 = vmatprep.subr.bf16.mxu0 0
        %514 = vmatpush1.bf16.msra.mxu0 %v508
        %515 = vmatprep.subr.bf16.mxu0 0
        %516 = vmatpush1.bf16.msra.mxu0 %v510
        %517 = vmatprep.subr.bf16.mxu0 0
        %518 = vmatpush1.bf16.msra.mxu0 0
        %519 = vmatprep.subr.bf16.mxu0 0
        %520 = vmatpush1.bf16.msra.mxu0 0
        %521 = vmatprep.subr.bf16.mxu0 0
        %522 = vmatpush1.bf16.msra.mxu0 0
        %523 = vmatprep.subr.bf16.mxu0 0
        %524 = vmatpush1.bf16.msra.mxu0 0
        %525 = vmatprep.subr.bf16.mxu0 0
        %526 = vmatpush1.bf16.msra.mxu0 0
        %527 = vmatprep.subr.bf16.mxu0 0
        %528 = vmatpush1.bf16.msra.mxu0 0
        %529 = vmatprep.subr.bf16.mxu0 0
        %530 = vmatpush1.bf16.msra.mxu0 0
        %531 = vmatprep.subr.bf16.mxu0 0
        %532 = vmatpush1.bf16.msra.mxu0 0
        %533 = vmatprep.subr.bf16.mxu0 0
        %534 = vmatpush1.bf16.msra.mxu0 0
        %535 = vmatprep.subr.bf16.mxu0 0
        %536 = vmatpush1.bf16.msra.mxu0 0
        %537 = vmatprep.subr.bf16.mxu0 0
        %538 = vmatpush1.bf16.msra.mxu0 0
        %539 = vmatprep.subr.bf16.mxu0 0
        %540 = vmatpush1.bf16.msra.mxu0 0
        %541 = vmatprep.subr.bf16.mxu0 0
        %542 = vmatpush1.bf16.msra.mxu0 0
        %543 = vmatprep.subr.bf16.mxu0 0
        %544 = vmatpush1.bf16.msra.mxu0 0
        %545 = vmatprep.mubr.bf16.mxu0 0
        %546 = vmatmul.mubr.bf16.gmra.mrb[0].mxu0 %v326
        %v547 = vpop.f32.mrb[0].mxu0
        %v548 = vadd.f32 0.0, %v547
        %v549 = vpop.f32.mrb[0].mxu0
        %v550 = vpop.f32.mrb[0].mxu0
        %v551 = vpop.f32.mrb[0].mxu0
        %552 = vdwg.mxu0
        %v553 = vmul.f32 %v548, %v306
        %v554 = vmul.f32 %v548, %v371
        %556 = vrot.lane.b32.xlu0 %v554, 124
        %v557 = vpop.permute.xlu0 %556
        %v559 = vsub.f32 %v553, %v557
        %v560 = vmul.f32 %v548, %v381
        %v561 = vmul.f32 %v548, %v307
        %563 = vrot.lane.b32.xlu0 %v561, 4
        %v564 = vpop.permute.xlu0 %563
        %v566 = vadd.f32 %v560, %v564
        %v567 = vsel %vm390, %v559, %v566
        %s568 = sadd.s32 %s392, 2
        %p569 = scmp.lt.s32.totalorder %s568, 6
        %s570 = scalar_select %p569, 1, 0
        %s571 = scvt.s32.f32 %s570
        %v572 = vstv %s571
        %v573 = vmul.f32 %v572, %v567
        %s574 = ssub.f32 1.0, %s571
        %v575 = vstv %s574
        %v576 = vmul.f32 %v575, %v548
        %v577 = vadd.f32 %v573, %v576
        %v578 = vpack.c.bf16 %v577, %v577
        %s579 = scalar_lea.vmem %s276, 8 [#allocation2]
        %580 = vst.msk [vmem:[%s579] sm:$0xf] %vm403, %v578
        %v581 = vld [vmem:[%s288] sm:$0xf]
        %v582 = vld [vmem:[%s288 + $0x4] sm:$0xf]
        %v583 = vld [vmem:[%s288 + $0x8] sm:$0xf]
        %v584 = vld [vmem:[%s288 + $0xc] sm:$0xf]
        %v589 = vunpack.c.l.b16 %v581
        %v590 = vunpack.c.l.b16 %v582
        %v591 = vunpack.c.l.b16 %v583
        %v592 = vunpack.c.l.b16 %v584
        %v593 = vpack.c.b16 %v590, %v589
        %v594 = vpack.c.b16 %v592, %v591
        %595 = vrot.lane.b32.xlu0 %v593, 104
        %v596 = vpop.permute.xlu0 %595
        %597 = vrot.lane.b32.xlu0 %v594, 104
        %v598 = vpop.permute.xlu0 %597
        %601 = vmatprep.subr.bf16.mxu0 0
        %602 = vmatpush1.bf16.msra.mxu0 %v596
        %603 = vmatprep.subr.bf16.mxu0 0
        %604 = vmatpush1.bf16.msra.mxu0 %v598
        %605 = vmatprep.subr.bf16.mxu0 0
        %606 = vmatpush1.bf16.msra.mxu0 0
        %607 = vmatprep.subr.bf16.mxu0 0
        %608 = vmatpush1.bf16.msra.mxu0 0
        %609 = vmatprep.subr.bf16.mxu0 0
        %610 = vmatpush1.bf16.msra.mxu0 0
        %611 = vmatprep.subr.bf16.mxu0 0
        %612 = vmatpush1.bf16.msra.mxu0 0
        %613 = vmatprep.subr.bf16.mxu0 0
        %614 = vmatpush1.bf16.msra.mxu0 0
        %615 = vmatprep.subr.bf16.mxu0 0
        %616 = vmatpush1.bf16.msra.mxu0 0
        %617 = vmatprep.subr.bf16.mxu0 0
        %618 = vmatpush1.bf16.msra.mxu0 0
        %619 = vmatprep.subr.bf16.mxu0 0
        %620 = vmatpush1.bf16.msra.mxu0 0
        %621 = vmatprep.subr.bf16.mxu0 0
        %622 = vmatpush1.bf16.msra.mxu0 0
        %623 = vmatprep.subr.bf16.mxu0 0
        %624 = vmatpush1.bf16.msra.mxu0 0
        %625 = vmatprep.subr.bf16.mxu0 0
        %626 = vmatpush1.bf16.msra.mxu0 0
        %627 = vmatprep.subr.bf16.mxu0 0
        %628 = vmatpush1.bf16.msra.mxu0 0
        %629 = vmatprep.subr.bf16.mxu0 0
        %630 = vmatpush1.bf16.msra.mxu0 0
        %631 = vmatprep.subr.bf16.mxu0 0
        %632 = vmatpush1.bf16.msra.mxu0 0
        %633 = vmatprep.mubr.bf16.mxu0 0
        %634 = vmatmul.mubr.bf16.gmra.mrb[0].mxu0 %v326
        %v635 = vpop.f32.mrb[0].mxu0
        %v636 = vadd.f32 0.0, %v635
        %v637 = vpop.f32.mrb[0].mxu0
        %v638 = vpop.f32.mrb[0].mxu0
        %v639 = vpop.f32.mrb[0].mxu0
        %640 = vdwg.mxu0
        %v641 = vmul.f32 %v636, %v306
        %v642 = vmul.f32 %v636, %v371
        %644 = vrot.lane.b32.xlu0 %v642, 124
        %v645 = vpop.permute.xlu0 %644
        %v647 = vsub.f32 %v641, %v645
        %v648 = vmul.f32 %v636, %v381
        %v649 = vmul.f32 %v636, %v307
        %651 = vrot.lane.b32.xlu0 %v649, 4
        %v652 = vpop.permute.xlu0 %651
        %v654 = vadd.f32 %v648, %v652
        %v655 = vsel %vm390, %v647, %v654
        %s656 = sadd.s32 %s392, 3
        %p657 = scmp.lt.s32.totalorder %s656, 6
        %s658 = scalar_select %p657, 1, 0
        %s659 = scvt.s32.f32 %s658
        %v660 = vstv %s659
        %v661 = vmul.f32 %v660, %v655
        %s662 = ssub.f32 1.0, %s659
        %v663 = vstv %s662
        %v664 = vmul.f32 %v663, %v636
        %v665 = vadd.f32 %v661, %v664
        %v666 = vpack.c.bf16 %v665, %v665
        %s667 = scalar_lea.vmem %s276, 12 [#allocation2]
        %668 = vst.msk [vmem:[%s667] sm:$0xf] %vm403, %v666
        %v669 = vld [vmem:[%s288] sm:$0xf]
        %v670 = vld [vmem:[%s288 + $0x4] sm:$0xf]
        %v671 = vld [vmem:[%s288 + $0x8] sm:$0xf]
        %v672 = vld [vmem:[%s288 + $0xc] sm:$0xf]
        %v677 = vunpack.c.l.b16 %v669
        %v678 = vunpack.c.l.b16 %v670
        %v679 = vunpack.c.l.b16 %v671
        %v680 = vunpack.c.l.b16 %v672
        %v681 = vpack.c.b16 %v678, %v677
        %v682 = vpack.c.b16 %v680, %v679
        %683 = vrot.lane.b32.xlu0 %v681, 96
        %v684 = vpop.permute.xlu0 %683
        %685 = vrot.lane.b32.xlu0 %v682, 96
        %v686 = vpop.permute.xlu0 %685
        %689 = vmatprep.subr.bf16.mxu0 0
        %690 = vmatpush1.bf16.msra.mxu0 %v684
        %691 = vmatprep.subr.bf16.mxu0 0
        %692 = vmatpush1.bf16.msra.mxu0 %v686
        %693 = vmatprep.subr.bf16.mxu0 0
        %694 = vmatpush1.bf16.msra.mxu0 0
        %695 = vmatprep.subr.bf16.mxu0 0
        %696 = vmatpush1.bf16.msra.mxu0 0
        %697 = vmatprep.subr.bf16.mxu0 0
        %698 = vmatpush1.bf16.msra.mxu0 0
        %699 = vmatprep.subr.bf16.mxu0 0
        %700 = vmatpush1.bf16.msra.mxu0 0
        %701 = vmatprep.subr.bf16.mxu0 0
        %702 = vmatpush1.bf16.msra.mxu0 0
        %703 = vmatprep.subr.bf16.mxu0 0
        %704 = vmatpush1.bf16.msra.mxu0 0
        %705 = vmatprep.subr.bf16.mxu0 0
        %706 = vmatpush1.bf16.msra.mxu0 0
        %707 = vmatprep.subr.bf16.mxu0 0
        %708 = vmatpush1.bf16.msra.mxu0 0
        %709 = vmatprep.subr.bf16.mxu0 0
        %710 = vmatpush1.bf16.msra.mxu0 0
        %711 = vmatprep.subr.bf16.mxu0 0
        %712 = vmatpush1.bf16.msra.mxu0 0
        %713 = vmatprep.subr.bf16.mxu0 0
        %714 = vmatpush1.bf16.msra.mxu0 0
        %715 = vmatprep.subr.bf16.mxu0 0
        %716 = vmatpush1.bf16.msra.mxu0 0
        %717 = vmatprep.subr.bf16.mxu0 0
        %718 = vmatpush1.bf16.msra.mxu0 0
        %719 = vmatprep.subr.bf16.mxu0 0
        %720 = vmatpush1.bf16.msra.mxu0 0
        %721 = vmatprep.mubr.bf16.mxu0 0
        %722 = vmatmul.mubr.bf16.gmra.mrb[0].mxu0 %v326
        %v723 = vpop.f32.mrb[0].mxu0
        %v724 = vadd.f32 0.0, %v723
        %v725 = vpop.f32.mrb[0].mxu0
        %v726 = vpop.f32.mrb[0].mxu0
        %v727 = vpop.f32.mrb[0].mxu0
        %728 = vdwg.mxu0
        %v729 = vmul.f32 %v724, %v306
        %v730 = vmul.f32 %v724, %v371
        %732 = vrot.lane.b32.xlu0 %v730, 124
        %v733 = vpop.permute.xlu0 %732
        %v735 = vsub.f32 %v729, %v733
        %v736 = vmul.f32 %v724, %v381
        %v737 = vmul.f32 %v724, %v307
        %739 = vrot.lane.b32.xlu0 %v737, 4
        %v740 = vpop.permute.xlu0 %739
        %v742 = vadd.f32 %v736, %v740
        %v743 = vsel %vm390, %v735, %v742
        %s744 = sadd.s32 %s392, 4
        %p745 = scmp.lt.s32.totalorder %s744, 6
        %s746 = scalar_select %p745, 1, 0
        %s747 = scvt.s32.f32 %s746
        %v748 = vstv %s747
        %v749 = vmul.f32 %v748, %v743
        %s750 = ssub.f32 1.0, %s747
        %v751 = vstv %s750
        %v752 = vmul.f32 %v751, %v724
        %v753 = vadd.f32 %v749, %v752
        %v754 = vpack.c.bf16 %v753, %v753
        %s755 = scalar_lea.vmem %s276, 16 [#allocation2]
        %756 = vst.msk [vmem:[%s755] sm:$0xf] %vm403, %v754
        %v757 = vld [vmem:[%s288] sm:$0xf]
        %v758 = vld [vmem:[%s288 + $0x4] sm:$0xf]
        %v759 = vld [vmem:[%s288 + $0x8] sm:$0xf]
        %v760 = vld [vmem:[%s288 + $0xc] sm:$0xf]
        %v765 = vunpack.c.l.b16 %v757
        %v766 = vunpack.c.l.b16 %v758
        %v767 = vunpack.c.l.b16 %v759
        %v768 = vunpack.c.l.b16 %v760
        %v769 = vpack.c.b16 %v766, %v765
        %v770 = vpack.c.b16 %v768, %v767
        %771 = vrot.lane.b32.xlu0 %v769, 88
        %v772 = vpop.permute.xlu0 %771
        %773 = vrot.lane.b32.xlu0 %v770, 88
        %v774 = vpop.permute.xlu0 %773
        %777 = vmatprep.subr.bf16.mxu0 0
        %778 = vmatpush1.bf16.msra.mxu0 %v772
        %779 = vmatprep.subr.bf16.mxu0 0
        %780 = vmatpush1.bf16.msra.mxu0 %v774
        %781 = vmatprep.subr.bf16.mxu0 0
        %782 = vmatpush1.bf16.msra.mxu0 0
        %783 = vmatprep.subr.bf16.mxu0 0
        %784 = vmatpush1.bf16.msra.mxu0 0
        %785 = vmatprep.subr.bf16.mxu0 0
        %786 = vmatpush1.bf16.msra.mxu0 0
        %787 = vmatprep.subr.bf16.mxu0 0
        %788 = vmatpush1.bf16.msra.mxu0 0
        %789 = vmatprep.subr.bf16.mxu0 0
        %790 = vmatpush1.bf16.msra.mxu0 0
        %791 = vmatprep.subr.bf16.mxu0 0
        %792 = vmatpush1.bf16.msra.mxu0 0
        %793 = vmatprep.subr.bf16.mxu0 0
        %794 = vmatpush1.bf16.msra.mxu0 0
        %795 = vmatprep.subr.bf16.mxu0 0
        %796 = vmatpush1.bf16.msra.mxu0 0
        %797 = vmatprep.subr.bf16.mxu0 0
        %798 = vmatpush1.bf16.msra.mxu0 0
        %799 = vmatprep.subr.bf16.mxu0 0
        %800 = vmatpush1.bf16.msra.mxu0 0
        %801 = vmatprep.subr.bf16.mxu0 0
        %802 = vmatpush1.bf16.msra.mxu0 0
        %803 = vmatprep.subr.bf16.mxu0 0
        %804 = vmatpush1.bf16.msra.mxu0 0
        %805 = vmatprep.subr.bf16.mxu0 0
        %806 = vmatpush1.bf16.msra.mxu0 0
        %807 = vmatprep.subr.bf16.mxu0 0
        %808 = vmatpush1.bf16.msra.mxu0 0
        %809 = vmatprep.mubr.bf16.mxu0 0
        %810 = vmatmul.mubr.bf16.gmra.mrb[0].mxu0 %v326
        %v811 = vpop.f32.mrb[0].mxu0
        %v812 = vadd.f32 0.0, %v811
        %v813 = vpop.f32.mrb[0].mxu0
        %v814 = vpop.f32.mrb[0].mxu0
        %v815 = vpop.f32.mrb[0].mxu0
        %816 = vdwg.mxu0
        %v817 = vmul.f32 %v812, %v306
        %v818 = vmul.f32 %v812, %v371
        %820 = vrot.lane.b32.xlu0 %v818, 124
        %v821 = vpop.permute.xlu0 %820
        %v823 = vsub.f32 %v817, %v821
        %v824 = vmul.f32 %v812, %v381
        %v825 = vmul.f32 %v812, %v307
        %827 = vrot.lane.b32.xlu0 %v825, 4
        %v828 = vpop.permute.xlu0 %827
        %v830 = vadd.f32 %v824, %v828
        %v831 = vsel %vm390, %v823, %v830
        %s832 = sadd.s32 %s392, 5
        %p833 = scmp.lt.s32.totalorder %s832, 6
        %s834 = scalar_select %p833, 1, 0
        %s835 = scvt.s32.f32 %s834
        %v836 = vstv %s835
        %v837 = vmul.f32 %v836, %v831
        %s838 = ssub.f32 1.0, %s835
        %v839 = vstv %s838
        %v840 = vmul.f32 %v839, %v812
        %v841 = vadd.f32 %v837, %v840
        %v842 = vpack.c.bf16 %v841, %v841
        %s843 = scalar_lea.vmem %s276, 20 [#allocation2]
        %844 = vst.msk [vmem:[%s843] sm:$0xf] %vm403, %v842
        %v845 = vld [vmem:[%s288] sm:$0xf]
        %v846 = vld [vmem:[%s288 + $0x4] sm:$0xf]
        %v847 = vld [vmem:[%s288 + $0x8] sm:$0xf]
        %v848 = vld [vmem:[%s288 + $0xc] sm:$0xf]
        %v853 = vunpack.c.l.b16 %v845
        %v854 = vunpack.c.l.b16 %v846
        %v855 = vunpack.c.l.b16 %v847
        %v856 = vunpack.c.l.b16 %v848
        %v857 = vpack.c.b16 %v854, %v853
        %v858 = vpack.c.b16 %v856, %v855
        %859 = vrot.lane.b32.xlu0 %v857, 80
        %v860 = vpop.permute.xlu0 %859
        %861 = vrot.lane.b32.xlu0 %v858, 80
        %v862 = vpop.permute.xlu0 %861
        %865 = vmatprep.subr.bf16.mxu0 0
        %866 = vmatpush1.bf16.msra.mxu0 %v860
        %867 = vmatprep.subr.bf16.mxu0 0
        %868 = vmatpush1.bf16.msra.mxu0 %v862
        %869 = vmatprep.subr.bf16.mxu0 0
        %870 = vmatpush1.bf16.msra.mxu0 0
        %871 = vmatprep.subr.bf16.mxu0 0
        %872 = vmatpush1.bf16.msra.mxu0 0
        %873 = vmatprep.subr.bf16.mxu0 0
        %874 = vmatpush1.bf16.msra.mxu0 0
        %875 = vmatprep.subr.bf16.mxu0 0
        %876 = vmatpush1.bf16.msra.mxu0 0
        %877 = vmatprep.subr.bf16.mxu0 0
        %878 = vmatpush1.bf16.msra.mxu0 0
        %879 = vmatprep.subr.bf16.mxu0 0
        %880 = vmatpush1.bf16.msra.mxu0 0
        %881 = vmatprep.subr.bf16.mxu0 0
        %882 = vmatpush1.bf16.msra.mxu0 0
        %883 = vmatprep.subr.bf16.mxu0 0
        %884 = vmatpush1.bf16.msra.mxu0 0
        %885 = vmatprep.subr.bf16.mxu0 0
        %886 = vmatpush1.bf16.msra.mxu0 0
        %887 = vmatprep.subr.bf16.mxu0 0
        %888 = vmatpush1.bf16.msra.mxu0 0
        %889 = vmatprep.subr.bf16.mxu0 0
        %890 = vmatpush1.bf16.msra.mxu0 0
        %891 = vmatprep.subr.bf16.mxu0 0
        %892 = vmatpush1.bf16.msra.mxu0 0
        %893 = vmatprep.subr.bf16.mxu0 0
        %894 = vmatpush1.bf16.msra.mxu0 0
        %895 = vmatprep.subr.bf16.mxu0 0
        %896 = vmatpush1.bf16.msra.mxu0 0
        %897 = vmatprep.mubr.bf16.mxu0 0
        %898 = vmatmul.mubr.bf16.gmra.mrb[0].mxu0 %v326
        %v899 = vpop.f32.mrb[0].mxu0
        %v900 = vadd.f32 0.0, %v899
        %v901 = vpop.f32.mrb[0].mxu0
        %v902 = vpop.f32.mrb[0].mxu0
        %v903 = vpop.f32.mrb[0].mxu0
        %904 = vdwg.mxu0
        %v905 = vmul.f32 %v900, %v306
        %v906 = vmul.f32 %v900, %v371
        %908 = vrot.lane.b32.xlu0 %v906, 124
        %v909 = vpop.permute.xlu0 %908
        %v911 = vsub.f32 %v905, %v909
        %v912 = vmul.f32 %v900, %v381
        %v913 = vmul.f32 %v900, %v307
        %915 = vrot.lane.b32.xlu0 %v913, 4
        %v916 = vpop.permute.xlu0 %915
        %v918 = vadd.f32 %v912, %v916
        %v919 = vsel %vm390, %v911, %v918
        %s920 = sadd.s32 %s392, 6
        %p921 = scmp.lt.s32.totalorder %s920, 6
        %s922 = scalar_select %p921, 1, 0
        %s923 = scvt.s32.f32 %s922
        %v924 = vstv %s923
        %v925 = vmul.f32 %v924, %v919
        %s926 = ssub.f32 1.0, %s923
        %v927 = vstv %s926
        %v928 = vmul.f32 %v927, %v900
        %v929 = vadd.f32 %v925, %v928
        %v930 = vpack.c.bf16 %v929, %v929
        %s931 = scalar_lea.vmem %s276, 24 [#allocation2]
        %932 = vst.msk [vmem:[%s931] sm:$0xf] %vm403, %v930
        %v933 = vld [vmem:[%s288] sm:$0xf]
        %v934 = vld [vmem:[%s288 + $0x4] sm:$0xf]
        %v935 = vld [vmem:[%s288 + $0x8] sm:$0xf]
        %v936 = vld [vmem:[%s288 + $0xc] sm:$0xf]
        %v941 = vunpack.c.l.b16 %v933
        %v942 = vunpack.c.l.b16 %v934
        %v943 = vunpack.c.l.b16 %v935
        %v944 = vunpack.c.l.b16 %v936
        %v945 = vpack.c.b16 %v942, %v941
        %v946 = vpack.c.b16 %v944, %v943
        %947 = vrot.lane.b32.xlu0 %v945, 72
        %v948 = vpop.permute.xlu0 %947
        %949 = vrot.lane.b32.xlu0 %v946, 72
        %v950 = vpop.permute.xlu0 %949
        %953 = vmatprep.subr.bf16.mxu0 0
        %954 = vmatpush1.bf16.msra.mxu0 %v948
        %955 = vmatprep.subr.bf16.mxu0 0
        %956 = vmatpush1.bf16.msra.mxu0 %v950
        %957 = vmatprep.subr.bf16.mxu0 0
        %958 = vmatpush1.bf16.msra.mxu0 0
        %959 = vmatprep.subr.bf16.mxu0 0
        %960 = vmatpush1.bf16.msra.mxu0 0
        %961 = vmatprep.subr.bf16.mxu0 0
        %962 = vmatpush1.bf16.msra.mxu0 0
        %963 = vmatprep.subr.bf16.mxu0 0
        %964 = vmatpush1.bf16.msra.mxu0 0
        %965 = vmatprep.subr.bf16.mxu0 0
        %966 = vmatpush1.bf16.msra.mxu0 0
        %967 = vmatprep.subr.bf16.mxu0 0
        %968 = vmatpush1.bf16.msra.mxu0 0
        %969 = vmatprep.subr.bf16.mxu0 0
        %970 = vmatpush1.bf16.msra.mxu0 0
        %971 = vmatprep.subr.bf16.mxu0 0
        %972 = vmatpush1.bf16.msra.mxu0 0
        %973 = vmatprep.subr.bf16.mxu0 0
        %974 = vmatpush1.bf16.msra.mxu0 0
        %975 = vmatprep.subr.bf16.mxu0 0
        %976 = vmatpush1.bf16.msra.mxu0 0
        %977 = vmatprep.subr.bf16.mxu0 0
        %978 = vmatpush1.bf16.msra.mxu0 0
        %979 = vmatprep.subr.bf16.mxu0 0
        %980 = vmatpush1.bf16.msra.mxu0 0
        %981 = vmatprep.subr.bf16.mxu0 0
        %982 = vmatpush1.bf16.msra.mxu0 0
        %983 = vmatprep.subr.bf16.mxu0 0
        %984 = vmatpush1.bf16.msra.mxu0 0
        %985 = vmatprep.mubr.bf16.mxu0 0
        %986 = vmatmul.mubr.bf16.gmra.mrb[0].mxu0 %v326
        %v987 = vpop.f32.mrb[0].mxu0
        %v988 = vadd.f32 0.0, %v987
        %v989 = vpop.f32.mrb[0].mxu0
        %v990 = vpop.f32.mrb[0].mxu0
        %v991 = vpop.f32.mrb[0].mxu0
        %992 = vdwg.mxu0
        %v993 = vmul.f32 %v988, %v306
        %v994 = vmul.f32 %v988, %v371
        %996 = vrot.lane.b32.xlu0 %v994, 124
        %v997 = vpop.permute.xlu0 %996
        %v999 = vsub.f32 %v993, %v997
        %v1000 = vmul.f32 %v988, %v381
        %v1001 = vmul.f32 %v988, %v307
        %1003 = vrot.lane.b32.xlu0 %v1001, 4
        %v1004 = vpop.permute.xlu0 %1003
        %v1006 = vadd.f32 %v1000, %v1004
        %v1007 = vsel %vm390, %v999, %v1006
        %s1008 = sadd.s32 %s392, 7
        %p1009 = scmp.lt.s32.totalorder %s1008, 6
        %s1010 = scalar_select %p1009, 1, 0
        %s1011 = scvt.s32.f32 %s1010
        %v1012 = vstv %s1011
        %v1013 = vmul.f32 %v1012, %v1007
        %s1014 = ssub.f32 1.0, %s1011
        %v1015 = vstv %s1014
        %v1016 = vmul.f32 %v1015, %v988
        %v1017 = vadd.f32 %v1013, %v1016
        %v1018 = vpack.c.bf16 %v1017, %v1017
        %s1019 = scalar_lea.vmem %s276, 28 [#allocation2]
        %1020 = vst.msk [vmem:[%s1019] sm:$0xf] %vm403, %v1018
        %s1021 = sand.u32 %s159, 1
        %s1022 = scalar_lea.sflag [#allocation3], %s1021
        %s1023 = sand.u32 %s159, 1
        %s1024 = smul.addr %s1023, 32
        %s1025 = scalar_lea.vmem [#allocation2], %s1024
        // Predicated region
        $region37: #{tpu_custom_call.1} parent=35 // pred_check
          %p1026 = pneg %p169
        $region38: #{tpu_custom_call.1} parent=35 // pred_check_branch
          %1028 = sbr.rel (%p1026) target = $region40
        $region39: #{tpu_custom_call.1} parent=35 // pred_region
          %s1029 = smul.u32 8, %s25
          %s1031 = ssub.s32 512, 512
          %1032 = vsyncadd %s1022, %s1031
          %s1033 = sadd.s32 %s24, %s1029
          %s1034 = smul.addr %s23, 8
          %s1035 = sadd.s32 %s1033, %s1034
          %s1036 = smul.addr %s1035, 64
          %s1037 = scalar_lea.hbm %s4, %s1036
          %s1038 = sshll.u32 %s1025, 4
          %s1039 = int_to_ptr.vmem [resolvable:$true] %s1038
          %1044 = dma.vmem_to_hbm [thread:$0]  %s1039, 512, %s1037, %s1022, 64, 64, 4
        $region40: #{tpu_custom_call.1} parent=35 // pred_fallthru
          _
      $region36: #{tpu_custom_call.1} parent=5 // pred_fallthru
        _
      %p1045 = scmp.le.s32.totalorder 2, %s13
      // Predicated region
      $region41: #{tpu_custom_call.1} parent=5 // pred_check
        %p1046 = pneg %p1045
      $region42: #{tpu_custom_call.1} parent=5 // pred_check_branch
        %1048 = sbr.rel (%p1046) target = $region44
      $region43: #{tpu_custom_call.1} parent=5 // pred_region
        %s1049 = ssub.s32 %s13, 2
        // Predicated region
        $region45: #{tpu_custom_call.1} parent=43 // pred_check
          %p1050 = pneg %p175
        $region46: #{tpu_custom_call.1} parent=43 // pred_check_branch
          %1052 = sbr.rel (%p1050) target = $region48
        $region47: #{tpu_custom_call.1} parent=43 // pred_region
          %s1053 = sand.u32 %s160, 1
          %s1054 = scalar_lea.sflag [#allocation3], %s1053
          %s1055 = sand.u32 %s160, 1
          %s1056 = smul.addr %s1055, 32
          %s1057 = scalar_lea.vmem [#allocation2], %s1056
          %1058 = dma.done %s1054, 512
        $region48: #{tpu_custom_call.1} parent=43 // pred_fallthru
          _
      $region44: #{tpu_custom_call.1} parent=5 // pred_fallthru
        _
    $region6: #{tpu_custom_call.1} parent=1 // loop_footer
      %s17 = sadd.s32 1, %s13
    $region7: #{tpu_custom_call.1} parent=1 // loop_footer_branch
      %12 = sbr.rel target = $region3
    $region8: #{tpu_custom_call.1} parent=1 // loop_exit
      _
    %1059 = vsyncpa [#allocation3], 1
    %s1060 = scalar_lea.sflag [#allocation3], 1
    %1061 = vsyncpa %s1060, 1

</llo_original>
